<compile_context>
chip_gen: v6e
topology: v6e:2x2x1
jax: 0.10.0
libtpu: 0.0.40
codegen_flags: <defaults>
</compile_context>

<pallas_src>
import functools

import jax
import jax.numpy as jnp
import numpy as np
from jax.experimental import pallas as pl
from jax.experimental.pallas import tpu as pltpu


def _round_up(x, m):
    return (x + m - 1) // m * m


def lsa_scan_kernel(q_ref, encb_ref, wq_ref, wcum_ref, wattn_ref, sv_ref,
                    scores_ref, final_cum_ref, cum_ref, attn_ref):
    """One decode step of the scanned LSA loop.

    q_ref         : (1, B, D)   this step's query block of the (n_steps, B, D) input
    encb_ref      : (B, T*D)    encoder_seq_proj + (W_b + L_b), VMEM-resident
    wq_ref        : (D, T*D)    W^T tiled over T
    wcum_ref      : (TP, T*D)   Toeplitz(conv[:, cum ch]) fused with L (rows >= T zero)
    wattn_ref     : (TP, T*D)   Toeplitz(conv[:, attn ch]) fused with L
    sv_ref        : (T*D, TP)   block-diagonal v selector, zero-padded to 128 lanes
    scores_ref    : (1, B, TP)  this step's scores (lane-dense, zeros beyond T)
    final_cum_ref : (B, TP)     final cumulative attention (constant block index)
    cum_ref/attn_ref : (B, TP)  VMEM scratch carried across grid steps
    """
    step = pl.program_id(0)
    D = wq_ref.shape[0]
    T = encb_ref.shape[1] // D

    @pl.when(step == 0)
    def _():  # init_attention (t == 0) — structural, not a traced Python branch
        cum_ref[...] = jnp.zeros_like(cum_ref)
        attn_ref[...] = jnp.zeros_like(attn_ref)

    q = q_ref[0]                                                      # (B, D)

    # pre-tanh term = W(query) tiled over T + L(conv(location)); biases are
    # pre-folded into encb.  Three small resident-weight MXU matmuls, no
    # in-kernel concatenation or reshape.
    pre = (jnp.dot(q, wq_ref[...], preferred_element_type=jnp.float32)
           + jnp.dot(cum_ref[...], wcum_ref[...], preferred_element_type=jnp.float32)
           + jnp.dot(attn_ref[...], wattn_ref[...], preferred_element_type=jnp.float32))
    h = jnp.tanh(pre + encb_ref[...])                                 # (B, T*D)

    # u[b, t] = sum_d v[d] * h[b, t*D + d] via block-diagonal matmul onto a
    # 128-lane padded score axis (no relayout, lane-dense output).
    u = jnp.dot(h, sv_ref[...], preferred_element_type=jnp.float32)   # (B, TP)
    lane = jax.lax.broadcasted_iota(jnp.int32, u.shape, 1)
    sig = jnp.where(lane < T, jax.nn.sigmoid(u), 0.0)
    denom = jnp.sum(sig, axis=1, keepdims=True)                       # (B, 1)
    scores = sig / denom                                              # exact divide

    new_cum = cum_ref[...] + scores
    scores_ref[0] = scores             # single unmasked 128-lane store per step
    attn_ref[...] = scores
    cum_ref[...] = new_cum
    final_cum_ref[...] = new_cum       # resident block; written back to HBM once


def precompute_lsa_weights(params, T, TP=None):
    """Fold conv + L + W + biases + v into static slabs (done once, outside decode)."""
    conv_w = params["conv_w"]                       # (filters, 2, K)  torch Conv1d layout
    L_w, L_b = params["L_w"], params["L_b"]         # (D, F), (D,)
    W_w, W_b = params["W_w"], params["W_b"]         # (D, D), (D,)
    v_w = params["v_w"]                             # (1, D)
    _, _, K = conv_w.shape
    D = W_w.shape[0]
    pad = (K - 1) // 2                              # assumes odd K (torch 'same' padding)
    if TP is None:
        TP = max(128, _round_up(T, 128))

    # conv fused with L:  CL[c, k, d] = sum_f conv_w[f, c, k] * L_w[d, f]
    CL = jnp.einsum("fck,df->ckd", conv_w, L_w)                           # (2, K, D)

    # Toeplitz gather: A[c, tau, t, d] = CL[c, tau - t + pad, d] when tap in range
    tau = np.arange(T)[:, None]
    tt = np.arange(T)[None, :]
    k_idx = tau - tt + pad                                                # (T, T)
    valid = (k_idx >= 0) & (k_idx < K)
    k_clip = np.clip(k_idx, 0, K - 1)
    A = CL[:, k_clip, :] * jnp.asarray(valid, CL.dtype)[None, :, :, None]  # (2, T, T, D)
    # TODO(synk): keep only the K-wide band for large T (O(T*K*D)) instead of dense O(T^2*D).
    wcum = jnp.zeros((TP, T * D), jnp.float32).at[:T].set(A[0].reshape(T, T * D))
    wattn = jnp.zeros((TP, T * D), jnp.float32).at[:T].set(A[1].reshape(T, T * D))

    # query projection tiled over T (cols (t, d) <- W_w[d, :]) and combined bias
    wq = jnp.tile(W_w.T, (1, T)).astype(jnp.float32)                      # (D, T*D)
    bias = jnp.tile((W_b + L_b)[None, :], (1, T)).astype(jnp.float32)     # (1, T*D)

    # block-diagonal v selector: sv[t*D+d, t'] = v[d] * (t == t'), 128-lane padded
    sv = jnp.kron(jnp.eye(T, dtype=jnp.float32), v_w.reshape(D, 1).astype(jnp.float32))
    sv_pad = jnp.zeros((T * D, TP), jnp.float32).at[:, :T].set(sv)        # (T*D, TP)

    # keep f32 everywhere: DMA savings from bf16 are negligible at these sizes
    # and v5e has no bf16 VPU/EUP path anyway (perf review).
    return {"wq": wq, "wcum": wcum, "wattn": wattn, "sv": sv_pad, "bias": bias, "TP": TP}


def lsa_decode(packed, encoder_seq_proj, queries):
    """Run ALL decode steps in one pallas_call.

    queries: (n_steps, B, D).  Returns
      ctx    : (n_steps, B, 1, T)  per-step `scores.unsqueeze(-1).transpose(1, 2)`
      scores : (n_steps, B, T)     per-step attention (== module's self.attention)
      cum    : (B, T)              final cumulative attention
    """
    n_steps, B, D = queries.shape
    _, T, _ = encoder_seq_proj.shape
    TP = packed["TP"]
    TD = T * D

    # bias fold + flatten: once per decode, not per step
    encb = encoder_seq_proj.reshape(B, TD) + packed["bias"]

    const2 = lambda s: (0, 0)   # constant block index -> DMA'd once, VMEM-resident
    grid_spec = pltpu.PrefetchScalarGridSpec(
        num_scalar_prefetch=0,
        grid=(n_steps,),
        in_specs=[
            pl.BlockSpec((1, B, D), lambda s: (s, 0, 0)),   # per-step query
            pl.BlockSpec((B, TD), const2),                  # encoder proj (+bias)
            pl.BlockSpec((D, TD), const2),                  # wq
            pl.BlockSpec((TP, TD), const2),                 # wcum
            pl.BlockSpec((TP, TD), const2),                 # wattn
            pl.BlockSpec((TD, TP), const2),                 # sv
        ],
        out_specs=(
            pl.BlockSpec((1, B, TP), lambda s: (s, 0, 0)),  # per-step scores
            pl.BlockSpec((B, TP), const2),                  # final cumulative
        ),
        scratch_shapes=[pltpu.VMEM((B, TP), jnp.float32),   # cumulative (carried)
                        pltpu.VMEM((B, TP), jnp.float32)],  # attention  (carried)
    )

    scores_pad, cum_pad = pl.pallas_call(
        lsa_scan_kernel,
        out_shape=(jax.ShapeDtypeStruct((n_steps, B, TP), jnp.float32),
                   jax.ShapeDtypeStruct((B, TP), jnp.float32)),
        grid_spec=grid_spec,
        compiler_params=pltpu.CompilerParams(
            dimension_semantics=("arbitrary",),             # state carries across steps
            vmem_limit_bytes=32 * 1024 * 1024),             # explicit budget (v7x phys = 64 MiB)
    )(queries, encb, packed["wq"], packed["wcum"], packed["wattn"], packed["sv"])

    scores = scores_pad[..., :T]        # drop lane padding once, outside the hot loop
    ctx = scores[:, :, None, :]         # (n_steps, B, 1, T)
    return ctx, scores, cum_pad[:, :T]


def lsa_reference(params, enc, queries):
    """Pure-JAX reference of the PyTorch module, stepped sequentially from t=0."""
    B, T, D = enc.shape
    cum = jnp.zeros((B, T), jnp.float32)
    attn = jnp.zeros((B, T), jnp.float32)
    pad = (params["conv_w"].shape[-1] - 1) // 2
    outs = []
    for _t in range(queries.shape[0]):
        q = queries[_t]
        pq = q @ params["W_w"].T + params["W_b"]
        loc = jnp.stack([cum, attn], axis=1)
        conv = jax.lax.conv_general_dilated(loc, params["conv_w"], (1,), [(pad, pad)],
                                            dimension_numbers=("NCH", "OIH", "NCH"))
        ploc = jnp.transpose(conv, (0, 2, 1)) @ params["L_w"].T + params["L_b"]
        u = (jnp.tanh(pq[:, None, :] + enc + ploc) @ params["v_w"].T)[..., 0]
        sig = jax.nn.sigmoid(u)
        scores = sig / sig.sum(axis=1, keepdims=True)
        attn = scores
        cum = cum + scores
        outs.append(scores)
    return jnp.stack(outs), cum


if __name__ == "__main__":
    # batch=8 fills all 8 vreg sublanes of the matmul M dim (perf review).
    B, T, D = 8, 16, 32            # batch, encoder length, attn_dim
    FILTERS, KSIZE = 32, 31
    N_STEPS = 6

    key = jax.random.PRNGKey(0)
    ks = jax.random.split(key, 8)
    params = {
        "conv_w": 0.1 * jax.random.normal(ks[0], (FILTERS, 2, KSIZE), jnp.float32),
        "L_w":    0.1 * jax.random.normal(ks[1], (D, FILTERS), jnp.float32),
        "L_b":    0.1 * jax.random.normal(ks[2], (D,), jnp.float32),
        "W_w":    0.1 * jax.random.normal(ks[3], (D, D), jnp.float32),
        "W_b":    0.1 * jax.random.normal(ks[4], (D,), jnp.float32),
        "v_w":    0.1 * jax.random.normal(ks[5], (1, D), jnp.float32),
    }
    enc = 0.5 * jax.random.normal(ks[6], (B, T, D), jnp.float32)
    queries = 0.5 * jax.random.normal(ks[7], (N_STEPS, B, D), jnp.float32)

    # Static weight fusion happens ONCE, outside the decode loop.
    packed = precompute_lsa_weights(params, T)

    run = jax.jit(functools.partial(lsa_decode, packed))
    ctx, scores, final_cum = run(enc, queries)
    jax.block_until_ready((ctx, scores, final_cum))

    # sanity check against a pure-JAX reference of the torch module semantics
    ref_scores, ref_cum = lsa_reference(params, enc, queries)
    np.testing.assert_allclose(np.asarray(scores), np.asarray(ref_scores),
                               rtol=1e-5, atol=1e-5)
    np.testing.assert_allclose(np.asarray(final_cum), np.asarray(ref_cum),
                               rtol=1e-5, atol=1e-5)
    np.testing.assert_allclose(np.asarray(ctx[:, :, 0, :]), np.asarray(ref_scores),
                               rtol=1e-5, atol=1e-5)
    assert ctx.shape == (N_STEPS, B, 1, T)
    print("KERNEL_OK")
</pallas_src>

<mosaic_0001>
module attributes {stable_mosaic.version = 11 : i64} {
  func.func @lsa_scan_kernel(%arg0: i32, %arg1: memref<1x8x32xf32, #tpu.memory_space<vmem>>, %arg2: memref<8x512xf32, #tpu.memory_space<vmem>>, %arg3: memref<32x512xf32, #tpu.memory_space<vmem>>, %arg4: memref<128x512xf32, #tpu.memory_space<vmem>>, %arg5: memref<128x512xf32, #tpu.memory_space<vmem>>, %arg6: memref<512x128xf32, #tpu.memory_space<vmem>>, %arg7: memref<1x8x128xf32, #tpu.memory_space<vmem>>, %arg8: memref<8x128xf32, #tpu.memory_space<vmem>>, %arg9: memref<8x128xf32, #tpu.memory_space<vmem>>, %arg10: memref<8x128xf32, #tpu.memory_space<vmem>>) attributes {dimension_semantics = [#tpu.dimension_semantics<arbitrary>], iteration_bounds = array<i64: 6>, scalar_prefetch = 0 : i64, scratch_operands = 2 : i64, tpu.core_type = #tpu.core_type<tc>, window_params = [{transform_indices = @transform_0, window_bounds = array<i64: 1, 8, 32>}, {pipeline_mode = #tpu.pipeline_mode<synchronous>, transform_indices = @transform_1, window_bounds = array<i64: 8, 512>}, {pipeline_mode = #tpu.pipeline_mode<synchronous>, transform_indices = @transform_2, window_bounds = array<i64: 32, 512>}, {pipeline_mode = #tpu.pipeline_mode<synchronous>, transform_indices = @transform_3, window_bounds = array<i64: 128, 512>}, {pipeline_mode = #tpu.pipeline_mode<synchronous>, transform_indices = @transform_4, window_bounds = array<i64: 128, 512>}, {pipeline_mode = #tpu.pipeline_mode<synchronous>, transform_indices = @transform_5, window_bounds = array<i64: 512, 128>}, {transform_indices = @transform_6, window_bounds = array<i64: 1, 8, 128>}, {pipeline_mode = #tpu.pipeline_mode<synchronous>, transform_indices = @transform_7, window_bounds = array<i64: 8, 128>}]} {
    %c0_i32 = arith.constant 0 : i32
    %0 = arith.cmpi eq, %arg0, %c0_i32 : i32
    %1 = arith.extui %0 : i1 to i32
    %c0_i32_0 = arith.constant 0 : i32
    %2 = arith.cmpi ne, %1, %c0_i32_0 : i32
    scf.if %2 {
      %cst_34 = arith.constant 0.000000e+00 : f32
      %42 = vector.broadcast %cst_34 : f32 to vector<8x128xf32>
      %c0_35 = arith.constant 0 : index
      %c0_36 = arith.constant 0 : index
      %43 = vector.load %arg9[%c0_35, %c0_36] : memref<8x128xf32, #tpu.memory_space<vmem>>, vector<8x128xf32>
      tpu.vector_store %arg9[%c0_35, %c0_36], %42 {strides = array<i32>} : memref<8x128xf32, #tpu.memory_space<vmem>>, vector<8x128xf32>,
      %cst_37 = arith.constant 0.000000e+00 : f32
      %44 = vector.broadcast %cst_37 : f32 to vector<8x128xf32>
      %c0_38 = arith.constant 0 : index
      %c0_39 = arith.constant 0 : index
      %45 = vector.load %arg10[%c0_38, %c0_39] : memref<8x128xf32, #tpu.memory_space<vmem>>, vector<8x128xf32>
      tpu.vector_store %arg10[%c0_38, %c0_39], %44 {strides = array<i32>} : memref<8x128xf32, #tpu.memory_space<vmem>>, vector<8x128xf32>,
    } else {
    }
    %c0 = arith.constant 0 : index
    %c0_1 = arith.constant 0 : index
    %c0_2 = arith.constant 0 : index
    %3 = vector.load %arg1[%c0, %c0_1, %c0_2] : memref<1x8x32xf32, #tpu.memory_space<vmem>>, vector<1x8x32xf32>
    %4 = vector.shape_cast %3 : vector<1x8x32xf32> to vector<8x32xf32>
    %c0_3 = arith.constant 0 : index
    %c0_4 = arith.constant 0 : index
    %5 = vector.load %arg3[%c0_3, %c0_4] : memref<32x512xf32, #tpu.memory_space<vmem>>, vector<32x512xf32>
    %cst = arith.constant dense<0.000000e+00> : vector<8x512xf32>
    %6 = tpu.matmul %4, %5, %cst {dimension_numbers = #tpu.dot_dimension_numbers<[1], [0], [0], [1], [0, 0, 1, 1], [], []>} : vector<8x32xf32>, vector<32x512xf32>, vector<8x512xf32> -> vector<8x512xf32>
    %c0_5 = arith.constant 0 : index
    %c0_6 = arith.constant 0 : index
    %7 = vector.load %arg9[%c0_5, %c0_6] : memref<8x128xf32, #tpu.memory_space<vmem>>, vector<8x128xf32>
    %c0_7 = arith.constant 0 : index
    %c0_8 = arith.constant 0 : index
    %8 = vector.load %arg4[%c0_7, %c0_8] : memref<128x512xf32, #tpu.memory_space<vmem>>, vector<128x512xf32>
    %cst_9 = arith.constant dense<0.000000e+00> : vector<8x512xf32>
    %9 = tpu.matmul %7, %8, %cst_9 {dimension_numbers = #tpu.dot_dimension_numbers<[1], [0], [0], [1], [0, 0, 1, 1], [], []>} : vector<8x128xf32>, vector<128x512xf32>, vector<8x512xf32> -> vector<8x512xf32>
    %10 = arith.addf %6, %9 : vector<8x512xf32>
    %c0_10 = arith.constant 0 : index
    %c0_11 = arith.constant 0 : index
    %11 = vector.load %arg10[%c0_10, %c0_11] : memref<8x128xf32, #tpu.memory_space<vmem>>, vector<8x128xf32>
    %c0_12 = arith.constant 0 : index
    %c0_13 = arith.constant 0 : index
    %12 = vector.load %arg5[%c0_12, %c0_13] : memref<128x512xf32, #tpu.memory_space<vmem>>, vector<128x512xf32>
    %cst_14 = arith.constant dense<0.000000e+00> : vector<8x512xf32>
    %13 = tpu.matmul %11, %12, %cst_14 {dimension_numbers = #tpu.dot_dimension_numbers<[1], [0], [0], [1], [0, 0, 1, 1], [], []>} : vector<8x128xf32>, vector<128x512xf32>, vector<8x512xf32> -> vector<8x512xf32>
    %14 = arith.addf %10, %13 : vector<8x512xf32>
    %c0_15 = arith.constant 0 : index
    %c0_16 = arith.constant 0 : index
    %15 = vector.load %arg2[%c0_15, %c0_16] : memref<8x512xf32, #tpu.memory_space<vmem>>, vector<8x512xf32>
    %16 = arith.addf %14, %15 : vector<8x512xf32>
    %17 = math.tanh %16 : vector<8x512xf32>
    %c0_17 = arith.constant 0 : index
    %c0_18 = arith.constant 0 : index
    %18 = vector.load %arg6[%c0_17, %c0_18] : memref<512x128xf32, #tpu.memory_space<vmem>>, vector<512x128xf32>
    %cst_19 = arith.constant dense<0.000000e+00> : vector<8x128xf32>
    %19 = tpu.matmul %17, %18, %cst_19 {dimension_numbers = #tpu.dot_dimension_numbers<[1], [0], [0], [1], [0, 0, 1, 1], [], []>} : vector<8x512xf32>, vector<512x128xf32>, vector<8x128xf32> -> vector<8x128xf32>
    %20 = tpu.iota {dimensions = array<i32: 1>} : vector<8x128xi32>
    %c16_i32 = arith.constant 16 : i32
    %21 = vector.broadcast %c16_i32 : i32 to vector<8x128xi32>
    %22 = arith.cmpi slt, %20, %21 : vector<8x128xi32>
    %23 = arith.negf %19 : vector<8x128xf32>
    %24 = math.exp %23 : vector<8x128xf32>
    %cst_20 = arith.constant 1.000000e+00 : f32
    %25 = vector.broadcast %cst_20 : f32 to vector<8x128xf32>
    %26 = arith.addf %25, %24 : vector<8x128xf32>
    %27 = arith.divf %25, %26 : vector<8x128xf32>
    %cst_21 = arith.constant 0.000000e+00 : f32
    %28 = vector.broadcast %cst_21 : f32 to vector<8x128xf32>
    %29 = arith.select %22, %27, %28 : vector<8x128xi1>, vector<8x128xf32>
    %cst_22 = arith.constant dense<0.000000e+00> : vector<8xf32>
    %30 = vector.multi_reduction <add>, %29, %cst_22 [1] : vector<8x128xf32> to vector<8xf32>
    %31 = vector.shape_cast %30 : vector<8xf32> to vector<8x1xf32>
    %32 = vector.broadcast %31 : vector<8x1xf32> to vector<8x128xf32>
    %33 = arith.divf %29, %32 : vector<8x128xf32>
    %c0_23 = arith.constant 0 : index
    %c0_24 = arith.constant 0 : index
    %34 = vector.load %arg9[%c0_23, %c0_24] : memref<8x128xf32, #tpu.memory_space<vmem>>, vector<8x128xf32>
    %35 = arith.addf %34, %33 : vector<8x128xf32>
    %c0_25 = arith.constant 0 : index
    %c0_26 = arith.constant 0 : index
    %c0_27 = arith.constant 0 : index
    %36 = vector.load %arg7[%c0_25, %c0_26, %c0_27] : memref<1x8x128xf32, #tpu.memory_space<vmem>>, vector<1x8x128xf32>
    %37 = vector.shape_cast %36 : vector<1x8x128xf32> to vector<8x128xf32>
    %38 = vector.shape_cast %33 : vector<8x128xf32> to vector<1x8x128xf32>
    tpu.vector_store %arg7[%c0_25, %c0_26, %c0_27], %38 {strides = array<i32>} : memref<1x8x128xf32, #tpu.memory_space<vmem>>, vector<1x8x128xf32>,
    %c0_28 = arith.constant 0 : index
    %c0_29 = arith.constant 0 : index
    %39 = vector.load %arg10[%c0_28, %c0_29] : memref<8x128xf32, #tpu.memory_space<vmem>>, vector<8x128xf32>
    tpu.vector_store %arg10[%c0_28, %c0_29], %33 {strides = array<i32>} : memref<8x128xf32, #tpu.memory_space<vmem>>, vector<8x128xf32>,
    %c0_30 = arith.constant 0 : index
    %c0_31 = arith.constant 0 : index
    %40 = vector.load %arg9[%c0_30, %c0_31] : memref<8x128xf32, #tpu.memory_space<vmem>>, vector<8x128xf32>
    tpu.vector_store %arg9[%c0_30, %c0_31], %35 {strides = array<i32>} : memref<8x128xf32, #tpu.memory_space<vmem>>, vector<8x128xf32>,
    %c0_32 = arith.constant 0 : index
    %c0_33 = arith.constant 0 : index
    %41 = vector.load %arg8[%c0_32, %c0_33] : memref<8x128xf32, #tpu.memory_space<vmem>>, vector<8x128xf32>
    tpu.vector_store %arg8[%c0_32, %c0_33], %35 {strides = array<i32>} : memref<8x128xf32, #tpu.memory_space<vmem>>, vector<8x128xf32>,
    return
  }
  func.func @transform_0(%arg0: i32) -> (i32, i32, i32) {
    %c0_i32 = arith.constant 0 : i32
    %c0_i32_0 = arith.constant 0 : i32
    %c0_i32_1 = arith.constant 0 : i32
    return %arg0, %c0_i32, %c0_i32_0 : i32, i32, i32
  }
  func.func @transform_1(%arg0: i32) -> (i32, i32) {
    %c0_i32 = arith.constant 0 : i32
    %c0_i32_0 = arith.constant 0 : i32
    %c0_i32_1 = arith.constant 0 : i32
    return %c0_i32, %c0_i32_0 : i32, i32
  }
  func.func @transform_2(%arg0: i32) -> (i32, i32) {
    %c0_i32 = arith.constant 0 : i32
    %c0_i32_0 = arith.constant 0 : i32
    %c0_i32_1 = arith.constant 0 : i32
    return %c0_i32, %c0_i32_0 : i32, i32
  }
  func.func @transform_3(%arg0: i32) -> (i32, i32) {
    %c0_i32 = arith.constant 0 : i32
    %c0_i32_0 = arith.constant 0 : i32
    %c0_i32_1 = arith.constant 0 : i32
    return %c0_i32, %c0_i32_0 : i32, i32
  }
  func.func @transform_4(%arg0: i32) -> (i32, i32) {
    %c0_i32 = arith.constant 0 : i32
    %c0_i32_0 = arith.constant 0 : i32
    %c0_i32_1 = arith.constant 0 : i32
    return %c0_i32, %c0_i32_0 : i32, i32
  }
  func.func @transform_5(%arg0: i32) -> (i32, i32) {
    %c0_i32 = arith.constant 0 : i32
    %c0_i32_0 = arith.constant 0 : i32
    %c0_i32_1 = arith.constant 0 : i32
    return %c0_i32, %c0_i32_0 : i32, i32
  }
  func.func @transform_6(%arg0: i32) -> (i32, i32, i32) {
    %c0_i32 = arith.constant 0 : i32
    %c0_i32_0 = arith.constant 0 : i32
    %c0_i32_1 = arith.constant 0 : i32
    return %arg0, %c0_i32, %c0_i32_0 : i32, i32, i32
  }
  func.func @transform_7(%arg0: i32) -> (i32, i32) {
    %c0_i32 = arith.constant 0 : i32
    %c0_i32_0 = arith.constant 0 : i32
    %c0_i32_1 = arith.constant 0 : i32
    return %c0_i32, %c0_i32_0 : i32, i32
  }
}

</mosaic_0001>

<llo_original>
// kernel: lsa_decode.1
$region0: #{lsa_decode.1}
  #allocation0 [shape = 'u32[]', space=smem, size = 0x4, offset = 0x4, fixed_abs, tag = 'smem constant byte address 0x4 - core index']
  #allocation1 [shape = 'u32[144,128]{1,0:T(1,128)}', space=vmem, size = 0x12000, scoped, tag = 'internal scratch']
  #allocation2 [shape = 'f32[8,128]{1,0:T(8,128)}', space=vmem, size = 0x1000, scoped, tag = 'scratch operand']
  #allocation3 [shape = 'f32[8,128]{1,0:T(8,128)}', space=vmem, size = 0x1000, scoped, tag = 'scratch operand']
  %s0 = inlined_call_operand.vmem [shape: f32[6,8,32], index: 0, kind: input, shape index: {}]
  %s1 = inlined_call_operand.vmem [shape: f32[8,512], index: 1, kind: input, shape index: {}]
  %s2 = inlined_call_operand.vmem [shape: f32[32,512], index: 2, kind: input, shape index: {}]
  %s3 = inlined_call_operand.hbm [shape: f32[128,512], index: 3, kind: input, shape index: {}]
  %s4 = inlined_call_operand.hbm [shape: f32[128,512], index: 4, kind: input, shape index: {}]
  %s5 = inlined_call_operand.hbm [shape: f32[512,128], index: 5, kind: input, shape index: {}]
  %s6 = inlined_call_operand.vmem [shape: f32[6,8,128], index: 6, kind: output, shape index: {0}]
  %s7 = inlined_call_operand.hbm [shape: f32[8,128], index: 7, kind: output, shape index: {1}]
  %8 = xla_tuple %s6, %s7
  %s9 = sld [smem:[#allocation0]]
  $region81: #{lsa_decode.1} parent=0
    _
  %s11 = ssub.s32 1, %s9
  %s12 = scalar_select 0, %s11, %s9
  $region1: #{lsa_decode.1} parent=0
    #allocation4 [shape = 'u8[262144]{0}', space=vmem, size = 0x40000, scoped, tag = 'input window, operand 3, single buffered']
    #allocation5 [shape = 's32[2]{0}', space=sflag, size = 0x8, scoped, tag = 'scoped memory for lsa_decode.1']
    #allocation6 [shape = 's32[2]{0}', space=sflag, size = 0x8, scoped, tag = 'scoped memory for lsa_decode.1']
    #allocation7 [shape = 'u8[262144]{0}', space=vmem, size = 0x40000, scoped, tag = 'input window, operand 4, single buffered']
    #allocation8 [shape = 's32[1]{0}', space=sflag, size = 0x4, scoped, tag = 'scoped memory for lsa_decode.1']
    #allocation9 [shape = 'u8[262144]{0}', space=vmem, size = 0x40000, scoped, tag = 'input window, operand 5, single buffered']
    #allocation10 [shape = 'u8[4096]{0}', space=vmem, size = 0x1000, scoped, tag = 'output window, operand 1, single buffered']
    %13 = vsyncpa [#allocation5], 0
    %14 = vsyncpa [#allocation8], 0
    %15 = vsyncpa [#allocation6], 0
    loop: start=0, step=1, limit=8
    $region2: #{lsa_decode.1} parent=1 // loop_pre_header
      _
    $region3: #{lsa_decode.1} parent=1 // loop_header
      %s17 = sphi 0, %s21
      %p18 = scmp.ge.s32.totalorder %s17, 8
      %s27 = sphi 0, %s29
      %s30 = sphi 0, %s27
      %s31 = sphi 0, %s30
      %s47 = sphi 0, %s31
      %s51 = sphi 0, %s51
      %s53 = sphi 0, %s51
      %s54 = sphi 0, %s53
      %s68 = sphi 0, %s54
      %s72 = sphi 0, %s72
      %s74 = sphi 0, %s72
      %s75 = sphi 0, %s74
      %s89 = sphi 0, %s75
      %s93 = sphi 0, %s93
      %s95 = sphi 0, %s93
      %s96 = sphi 0, %s95
      %s110 = sphi 0, %s96
      %s114 = sphi 0, %s114
      %s116 = sphi 0, %s114
      %s117 = sphi 0, %s116
      %s131 = sphi 0, %s117
      %s135 = sphi 0, %s135
      %s137 = sphi 0, %s135
      %s138 = sphi 0, %s137
      %s152 = sphi 0, %s138
      %s158 = sphi 0, %s160
      %s161 = sphi 0, %s158
      %s162 = sphi 0, %s161
      %s178 = sphi 0, %s162
      %s182 = sphi 0, %s182
      %s184 = sphi 0, %s182
      %s185 = sphi 0, %s184
      %s199 = sphi 0, %s185
    $region4: #{lsa_decode.1} parent=1 // loop_header_branch
      %20 = sbr.rel (%p18) target = $region8
    $region5: #{lsa_decode.1} parent=1 // loop_body
      %s22 = ssub.s32 %s17, 1
      %s23 = ssub.s32 %s17, 2
      %s24 = sadd.s32 %s17, 1
      %s25 = ssub.s32 %s17, %s24
      %p26 = scmp.eq.s32.totalorder %s25, 0
      %s28 = sadd.s32 %s27, 1
      %s29 = scalar_select %p26, %s27, %s28
      %p32 = pneg %p26
      %p33 = scmp.eq.s32.totalorder %s17, 5
      %p34 = por %p32, %p33
      %p35 = scmp.ne.s32.totalorder %s27, %s30
      %p36 = scmp.eq.s32.totalorder %s17, 0
      %p37 = por %p35, %p36
      %p38 = scmp.ne.s32.totalorder %s27, %s30
      %p39 = scmp.eq.s32.totalorder %s22, 5
      %p40 = por %p38, %p39
      %p41 = scmp.ne.s32.totalorder %s30, %s31
      %p42 = scmp.eq.s32.totalorder %s22, 0
      %p43 = por %p41, %p42
      %p44 = scmp.ne.s32.totalorder %s30, %s31
      %p45 = scmp.eq.s32.totalorder %s23, 5
      %p46 = por %p44, %p45
      %p48 = scmp.ne.s32.totalorder %s31, %s47
      %p49 = scmp.eq.s32.totalorder %s23, 0
      %p50 = por %p48, %p49
      %s52 = sadd.s32 %s51, 1
      %p55 = scmp.eq.s32.totalorder %s17, 5
      %p56 = scmp.ne.s32.totalorder %s51, %s53
      %p57 = scmp.eq.s32.totalorder %s17, 0
      %p58 = por %p56, %p57
      %p59 = scmp.ne.s32.totalorder %s51, %s53
      %p60 = scmp.eq.s32.totalorder %s22, 5
      %p61 = por %p59, %p60
      %p62 = scmp.ne.s32.totalorder %s53, %s54
      %p63 = scmp.eq.s32.totalorder %s22, 0
      %p64 = por %p62, %p63
      %p65 = scmp.ne.s32.totalorder %s53, %s54
      %p66 = scmp.eq.s32.totalorder %s23, 5
      %p67 = por %p65, %p66
      %p69 = scmp.ne.s32.totalorder %s54, %s68
      %p70 = scmp.eq.s32.totalorder %s23, 0
      %p71 = por %p69, %p70
      %s73 = sadd.s32 %s72, 1
      %p76 = scmp.eq.s32.totalorder %s17, 5
      %p77 = scmp.ne.s32.totalorder %s72, %s74
      %p78 = scmp.eq.s32.totalorder %s17, 0
      %p79 = por %p77, %p78
      %p80 = scmp.ne.s32.totalorder %s72, %s74
      %p81 = scmp.eq.s32.totalorder %s22, 5
      %p82 = por %p80, %p81
      %p83 = scmp.ne.s32.totalorder %s74, %s75
      %p84 = scmp.eq.s32.totalorder %s22, 0
      %p85 = por %p83, %p84
      %p86 = scmp.ne.s32.totalorder %s74, %s75
      %p87 = scmp.eq.s32.totalorder %s23, 5
      %p88 = por %p86, %p87
      %p90 = scmp.ne.s32.totalorder %s75, %s89
      %p91 = scmp.eq.s32.totalorder %s23, 0
      %p92 = por %p90, %p91
      %s94 = sadd.s32 %s93, 1
      %p97 = scmp.eq.s32.totalorder %s17, 5
      %p98 = scmp.ne.s32.totalorder %s93, %s95
      %p99 = scmp.eq.s32.totalorder %s17, 0
      %p100 = por %p98, %p99
      %p101 = scmp.ne.s32.totalorder %s93, %s95
      %p102 = scmp.eq.s32.totalorder %s22, 5
      %p103 = por %p101, %p102
      %p104 = scmp.ne.s32.totalorder %s95, %s96
      %p105 = scmp.eq.s32.totalorder %s22, 0
      %p106 = por %p104, %p105
      %p107 = scmp.ne.s32.totalorder %s95, %s96
      %p108 = scmp.eq.s32.totalorder %s23, 5
      %p109 = por %p107, %p108
      %p111 = scmp.ne.s32.totalorder %s96, %s110
      %p112 = scmp.eq.s32.totalorder %s23, 0
      %p113 = por %p111, %p112
      %s115 = sadd.s32 %s114, 1
      %p118 = scmp.eq.s32.totalorder %s17, 5
      %p119 = scmp.ne.s32.totalorder %s114, %s116
      %p120 = scmp.eq.s32.totalorder %s17, 0
      %p121 = por %p119, %p120
      %p122 = scmp.ne.s32.totalorder %s114, %s116
      %p123 = scmp.eq.s32.totalorder %s22, 5
      %p124 = por %p122, %p123
      %p125 = scmp.ne.s32.totalorder %s116, %s117
      %p126 = scmp.eq.s32.totalorder %s22, 0
      %p127 = por %p125, %p126
      %p128 = scmp.ne.s32.totalorder %s116, %s117
      %p129 = scmp.eq.s32.totalorder %s23, 5
      %p130 = por %p128, %p129
      %p132 = scmp.ne.s32.totalorder %s117, %s131
      %p133 = scmp.eq.s32.totalorder %s23, 0
      %p134 = por %p132, %p133
      %s136 = sadd.s32 %s135, 1
      %p139 = scmp.eq.s32.totalorder %s17, 5
      %p140 = scmp.ne.s32.totalorder %s135, %s137
      %p141 = scmp.eq.s32.totalorder %s17, 0
      %p142 = por %p140, %p141
      %p143 = scmp.ne.s32.totalorder %s135, %s137
      %p144 = scmp.eq.s32.totalorder %s22, 5
      %p145 = por %p143, %p144
      %p146 = scmp.ne.s32.totalorder %s137, %s138
      %p147 = scmp.eq.s32.totalorder %s22, 0
      %p148 = por %p146, %p147
      %p149 = scmp.ne.s32.totalorder %s137, %s138
      %p150 = scmp.eq.s32.totalorder %s23, 5
      %p151 = por %p149, %p150
      %p153 = scmp.ne.s32.totalorder %s138, %s152
      %p154 = scmp.eq.s32.totalorder %s23, 0
      %p155 = por %p153, %p154
      %s156 = ssub.s32 %s17, %s24
      %p157 = scmp.eq.s32.totalorder %s156, 0
      %s159 = sadd.s32 %s158, 1
      %s160 = scalar_select %p157, %s158, %s159
      %p163 = pneg %p157
      %p164 = scmp.eq.s32.totalorder %s17, 5
      %p165 = por %p163, %p164
      %p166 = scmp.ne.s32.totalorder %s158, %s161
      %p167 = scmp.eq.s32.totalorder %s17, 0
      %p168 = por %p166, %p167
      %p169 = scmp.ne.s32.totalorder %s158, %s161
      %p170 = scmp.eq.s32.totalorder %s22, 5
      %p171 = por %p169, %p170
      %p172 = scmp.ne.s32.totalorder %s161, %s162
      %p173 = scmp.eq.s32.totalorder %s22, 0
      %p174 = por %p172, %p173
      %p175 = scmp.ne.s32.totalorder %s161, %s162
      %p176 = scmp.eq.s32.totalorder %s23, 5
      %p177 = por %p175, %p176
      %p179 = scmp.ne.s32.totalorder %s162, %s178
      %p180 = scmp.eq.s32.totalorder %s23, 0
      %p181 = por %p179, %p180
      %s183 = sadd.s32 %s182, 1
      %p186 = scmp.eq.s32.totalorder %s17, 5
      %p187 = scmp.ne.s32.totalorder %s182, %s184
      %p188 = scmp.eq.s32.totalorder %s17, 0
      %p189 = por %p187, %p188
      %p190 = scmp.ne.s32.totalorder %s182, %s184
      %p191 = scmp.eq.s32.totalorder %s22, 5
      %p192 = por %p190, %p191
      %p193 = scmp.ne.s32.totalorder %s184, %s185
      %p194 = scmp.eq.s32.totalorder %s22, 0
      %p195 = por %p193, %p194
      %p196 = scmp.ne.s32.totalorder %s184, %s185
      %p197 = scmp.eq.s32.totalorder %s23, 5
      %p198 = por %p196, %p197
      %p200 = scmp.ne.s32.totalorder %s185, %s199
      %p201 = scmp.eq.s32.totalorder %s23, 0
      %p202 = por %p200, %p201
      %p203 = scmp.le.s32.totalorder 1, %s17
      %p204 = scmp.lt.s32.totalorder %s17, 7
      %p205 = pnand %p203, %p204
      %p206 = pneg %p205
      // Predicated region
      $region9: #{lsa_decode.1} parent=5 // pred_check
        _
      $region10: #{lsa_decode.1} parent=5 // pred_check_branch
        %208 = sbr.rel (%p205) target = $region12
      $region11: #{lsa_decode.1} parent=5 // pred_region
        %s209 = ssub.s32 %s17, 1
        // Predicated region
        $region13: #{lsa_decode.1} parent=11 // pred_check
          %p210 = pneg %p64
        $region14: #{lsa_decode.1} parent=11 // pred_check_branch
          %212 = sbr.rel (%p210) target = $region16
        $region15: #{lsa_decode.1} parent=11 // pred_region
          _
        $region16: #{lsa_decode.1} parent=11 // pred_fallthru
          _
        // Predicated region
        $region17: #{lsa_decode.1} parent=11 // pred_check
          %p213 = pneg %p85
        $region18: #{lsa_decode.1} parent=11 // pred_check_branch
          %215 = sbr.rel (%p213) target = $region20
        $region19: #{lsa_decode.1} parent=11 // pred_region
          _
        $region20: #{lsa_decode.1} parent=11 // pred_fallthru
          _
        // Predicated region
        $region21: #{lsa_decode.1} parent=11 // pred_check
          %p216 = pneg %p106
        $region22: #{lsa_decode.1} parent=11 // pred_check_branch
          %218 = sbr.rel (%p216) target = $region24
        $region23: #{lsa_decode.1} parent=11 // pred_region
          %s220 = ssub.s32 8192, 8192
          %221 = vsyncadd [#allocation5], %s220
          %s222 = sshll.u32 [#allocation4], 4
          %s223 = int_to_ptr.vmem [resolvable:$true] %s222
          %228 = dma.hbm_to_vmem [thread:$0]  %s3, 8192, %s223, [#allocation5], 512, 512, 32
        $region24: #{lsa_decode.1} parent=11 // pred_fallthru
          _
        // Predicated region
        $region25: #{lsa_decode.1} parent=11 // pred_check
          %p229 = pneg %p127
        $region26: #{lsa_decode.1} parent=11 // pred_check_branch
          %231 = sbr.rel (%p229) target = $region28
        $region27: #{lsa_decode.1} parent=11 // pred_region
          %s233 = ssub.s32 8192, 8192
          %234 = vsyncadd [#allocation8], %s233
          %s235 = sshll.u32 [#allocation7], 4
          %s236 = int_to_ptr.vmem [resolvable:$true] %s235
          %241 = dma.hbm_to_vmem [thread:$0]  %s4, 8192, %s236, [#allocation8], 512, 512, 32
        $region28: #{lsa_decode.1} parent=11 // pred_fallthru
          _
        // Predicated region
        $region29: #{lsa_decode.1} parent=11 // pred_check
          %p242 = pneg %p148
        $region30: #{lsa_decode.1} parent=11 // pred_check_branch
          %244 = sbr.rel (%p242) target = $region32
        $region31: #{lsa_decode.1} parent=11 // pred_region
          %s246 = ssub.s32 8192, 8192
          %247 = vsyncadd [#allocation8], %s246
          %s248 = sshll.u32 [#allocation9], 4
          %s249 = int_to_ptr.vmem [resolvable:$true] %s248
          %254 = dma.hbm_to_vmem [thread:$0]  %s5, 8192, %s249, [#allocation8], 128, 128, 8
        $region32: #{lsa_decode.1} parent=11 // pred_fallthru
          _
      $region12: #{lsa_decode.1} parent=5 // pred_fallthru
        _
      %p255 = scmp.lt.s32.totalorder %s17, 6
      // Predicated region
      $region33: #{lsa_decode.1} parent=5 // pred_check
        %p256 = pneg %p255
      $region34: #{lsa_decode.1} parent=5 // pred_check_branch
        %258 = sbr.rel (%p256) target = $region36
      $region35: #{lsa_decode.1} parent=5 // pred_region
        // Predicated region
        $region37: #{lsa_decode.1} parent=35 // pred_check
          %p259 = pneg %p37
        $region38: #{lsa_decode.1} parent=35 // pred_check_branch
          %261 = sbr.rel (%p259) target = $region40
        $region39: #{lsa_decode.1} parent=35 // pred_region
          %p262 = scmp.lt.s32.totalorder %s17, 5
          %s263 = scalar_select %p262, %s17, 5
          %s264 = smul.addr %s263, 8
          %s265 = scalar_lea.vmem %s0, %s264
        $region40: #{lsa_decode.1} parent=35 // pred_fallthru
          _
      $region36: #{lsa_decode.1} parent=5 // pred_fallthru
        _
      %p266 = scmp.le.s32.totalorder 1, %s17
      %p267 = scmp.lt.s32.totalorder %s17, 7
      %p268 = pnand %p266, %p267
      %p269 = pneg %p268
      // Predicated region
      $region41: #{lsa_decode.1} parent=5 // pred_check
        _
      $region42: #{lsa_decode.1} parent=5 // pred_check_branch
        %271 = sbr.rel (%p268) target = $region44
      $region43: #{lsa_decode.1} parent=5 // pred_region
        %s272 = ssub.s32 %s17, 1
        // Predicated region
        $region45: #{lsa_decode.1} parent=43 // pred_check
          %p273 = pneg %p106
        $region46: #{lsa_decode.1} parent=43 // pred_check_branch
          %275 = sbr.rel (%p273) target = $region48
        $region47: #{lsa_decode.1} parent=43 // pred_region
          %276 = dma.done [#allocation5], 8192
        $region48: #{lsa_decode.1} parent=43 // pred_fallthru
          _
        // Predicated region
        $region49: #{lsa_decode.1} parent=43 // pred_check
          %p277 = pneg %p127
        $region50: #{lsa_decode.1} parent=43 // pred_check_branch
          %279 = sbr.rel (%p277) target = $region52
        $region51: #{lsa_decode.1} parent=43 // pred_region
          %280 = dma.done [#allocation8], 8192
        $region52: #{lsa_decode.1} parent=43 // pred_fallthru
          _
        // Predicated region
        $region53: #{lsa_decode.1} parent=43 // pred_check
          %p281 = pneg %p148
        $region54: #{lsa_decode.1} parent=43 // pred_check_branch
          %283 = sbr.rel (%p281) target = $region56
        $region55: #{lsa_decode.1} parent=43 // pred_region
          %284 = dma.done [#allocation8], 8192
        $region56: #{lsa_decode.1} parent=43 // pred_fallthru
          _
        %p285 = scmp.lt.s32.totalorder %s22, 5
        %s286 = scalar_select %p285, %s22, 5
        %s287 = smul.addr %s286, 8
        %s288 = scalar_lea.vmem %s0, %s287
        %p289 = pneg %p43
        %p290 = pneg %p40
        %p291 = pneg %p64
        %p292 = pneg %p61
        %p293 = pneg %p85
        %p294 = pneg %p82
        %p295 = pneg %p106
        %p296 = pneg %p103
        %p297 = pneg %p127
        %p298 = pneg %p124
        %p299 = pneg %p148
        %p300 = pneg %p145
        %p301 = pneg %p174
        %p302 = pneg %p171
        %p303 = scmp.lt.s32.totalorder %s22, 5
        %s304 = scalar_select %p303, %s22, 5
        %s305 = smul.addr %s304, 8
        %s306 = scalar_lea.vmem %s6, %s305
        %p307 = pneg %p195
        %p308 = pneg %p192
        %p309 = scmp.lt.s32.totalorder %s22, 5
        %s310 = scalar_select %p309, %s22, 5
        %s311 = smul.addr %s310, 8
        %s312 = scalar_lea.vmem %s0, %s311
        %p313 = scmp.lt.s32.totalorder %s22, 5
        %s314 = scalar_select %p313, %s22, 5
        %s315 = smul.addr %s314, 8
        %s316 = scalar_lea.vmem %s6, %s315
        %p317 = scmp.eq.s32.totalorder %s22, 0
        // Predicated region
        $region57: #{lsa_decode.1} parent=43 // pred_check
          %p318 = pneg %p317
        $region58: #{lsa_decode.1} parent=43 // pred_check_branch
          %320 = sbr.rel (%p318) target = $region60
        $region59: #{lsa_decode.1} parent=43 // pred_region
          %321 = vst [vmem:[#allocation2] sm:$0xff] 0.0
          %322 = vst [vmem:[#allocation3] sm:$0xff] 0.0
        $region60: #{lsa_decode.1} parent=43 // pred_fallthru
          _
        %v323 = vld [vmem:[%s312] sm:$0xff]
        %v324 = vld [vmem:[%s2] sm:$0xff]
        %v325 = vld [vmem:[%s2 + $0x8] sm:$0xff]
        %v326 = vld [vmem:[%s2 + $0x10] sm:$0xff]
        %v327 = vld [vmem:[%s2 + $0x18] sm:$0xff]
        %v328 = vld [vmem:[%s2 + $0x20] sm:$0xff]
        %v329 = vld [vmem:[%s2 + $0x28] sm:$0xff]
        %v330 = vld [vmem:[%s2 + $0x30] sm:$0xff]
        %v331 = vld [vmem:[%s2 + $0x38] sm:$0xff]
        %v332 = vld [vmem:[%s2 + $0x40] sm:$0xff]
        %v333 = vld [vmem:[%s2 + $0x48] sm:$0xff]
        %v334 = vld [vmem:[%s2 + $0x50] sm:$0xff]
        %v335 = vld [vmem:[%s2 + $0x58] sm:$0xff]
        %v336 = vld [vmem:[%s2 + $0x60] sm:$0xff]
        %v337 = vld [vmem:[%s2 + $0x68] sm:$0xff]
        %v338 = vld [vmem:[%s2 + $0x70] sm:$0xff]
        %v339 = vld [vmem:[%s2 + $0x78] sm:$0xff]
        %v340 = vld [vmem:[#allocation2] sm:$0xff]
        %v341 = vld [vmem:[#allocation4] sm:$0xff]
        %v342 = vld [vmem:[#allocation4 + $0x8] sm:$0xff]
        %v343 = vld [vmem:[#allocation4 + $0x10] sm:$0xff]
        %v344 = vld [vmem:[#allocation4 + $0x18] sm:$0xff]
        %v345 = vld [vmem:[#allocation4 + $0x20] sm:$0xff]
        %v346 = vld [vmem:[#allocation4 + $0x28] sm:$0xff]
        %v347 = vld [vmem:[#allocation4 + $0x30] sm:$0xff]
        %v348 = vld [vmem:[#allocation4 + $0x38] sm:$0xff]
        %v349 = vld [vmem:[#allocation4 + $0x40] sm:$0xff]
        %v350 = vld [vmem:[#allocation4 + $0x48] sm:$0xff]
        %v351 = vld [vmem:[#allocation4 + $0x50] sm:$0xff]
        %v352 = vld [vmem:[#allocation4 + $0x58] sm:$0xff]
        %v353 = vld [vmem:[#allocation4 + $0x60] sm:$0xff]
        %v354 = vld [vmem:[#allocation4 + $0x68] sm:$0xff]
        %v355 = vld [vmem:[#allocation4 + $0x70] sm:$0xff]
        %v356 = vld [vmem:[#allocation4 + $0x78] sm:$0xff]
        %v357 = vld [vmem:[#allocation4 + $0x80] sm:$0xff]
        %v358 = vld [vmem:[#allocation4 + $0x88] sm:$0xff]
        %v359 = vld [vmem:[#allocation4 + $0x90] sm:$0xff]
        %v360 = vld [vmem:[#allocation4 + $0x98] sm:$0xff]
        %v361 = vld [vmem:[#allocation4 + $0xa0] sm:$0xff]
        %v362 = vld [vmem:[#allocation4 + $0xa8] sm:$0xff]
        %v363 = vld [vmem:[#allocation4 + $0xb0] sm:$0xff]
        %v364 = vld [vmem:[#allocation4 + $0xb8] sm:$0xff]
        %v365 = vld [vmem:[#allocation4 + $0xc0] sm:$0xff]
        %v366 = vld [vmem:[#allocation4 + $0xc8] sm:$0xff]
        %v367 = vld [vmem:[#allocation4 + $0xd0] sm:$0xff]
        %v368 = vld [vmem:[#allocation4 + $0xd8] sm:$0xff]
        %v369 = vld [vmem:[#allocation4 + $0xe0] sm:$0xff]
        %v370 = vld [vmem:[#allocation4 + $0xe8] sm:$0xff]
        %v371 = vld [vmem:[#allocation4 + $0xf0] sm:$0xff]
        %v372 = vld [vmem:[#allocation4 + $0xf8] sm:$0xff]
        %v373 = vld [vmem:[#allocation4 + $0x100] sm:$0xff]
        %v374 = vld [vmem:[#allocation4 + $0x108] sm:$0xff]
        %v375 = vld [vmem:[#allocation4 + $0x110] sm:$0xff]
        %v376 = vld [vmem:[#allocation4 + $0x118] sm:$0xff]
        %v377 = vld [vmem:[#allocation4 + $0x120] sm:$0xff]
        %v378 = vld [vmem:[#allocation4 + $0x128] sm:$0xff]
        %v379 = vld [vmem:[#allocation4 + $0x130] sm:$0xff]
        %v380 = vld [vmem:[#allocation4 + $0x138] sm:$0xff]
        %v381 = vld [vmem:[#allocation4 + $0x140] sm:$0xff]
        %v382 = vld [vmem:[#allocation4 + $0x148] sm:$0xff]
        %v383 = vld [vmem:[#allocation4 + $0x150] sm:$0xff]
        %v384 = vld [vmem:[#allocation4 + $0x158] sm:$0xff]
        %v385 = vld [vmem:[#allocation4 + $0x160] sm:$0xff]
        %v386 = vld [vmem:[#allocation4 + $0x168] sm:$0xff]
        %v387 = vld [vmem:[#allocation4 + $0x170] sm:$0xff]
        %v388 = vld [vmem:[#allocation4 + $0x178] sm:$0xff]
        %v389 = vld [vmem:[#allocation4 + $0x180] sm:$0xff]
        %v390 = vld [vmem:[#allocation4 + $0x188] sm:$0xff]
        %v391 = vld [vmem:[#allocation4 + $0x190] sm:$0xff]
        %v392 = vld [vmem:[#allocation4 + $0x198] sm:$0xff]
        %v393 = vld [vmem:[#allocation4 + $0x1a0] sm:$0xff]
        %v394 = vld [vmem:[#allocation4 + $0x1a8] sm:$0xff]
        %v395 = vld [vmem:[#allocation4 + $0x1b0] sm:$0xff]
        %v396 = vld [vmem:[#allocation4 + $0x1b8] sm:$0xff]
        %v397 = vld [vmem:[#allocation4 + $0x1c0] sm:$0xff]
        %v398 = vld [vmem:[#allocation4 + $0x1c8] sm:$0xff]
        %v399 = vld [vmem:[#allocation4 + $0x1d0] sm:$0xff]
        %v400 = vld [vmem:[#allocation4 + $0x1d8] sm:$0xff]
        %v401 = vld [vmem:[#allocation4 + $0x1e0] sm:$0xff]
        %v402 = vld [vmem:[#allocation4 + $0x1e8] sm:$0xff]
        %v403 = vld [vmem:[#allocation4 + $0x1f0] sm:$0xff]
        %v404 = vld [vmem:[#allocation4 + $0x1f8] sm:$0xff]
        %405 = vmatprep.subr.mxu0 %v402
        %406 = vmatpush1.msra.mxu0 %v401
        %407 = vmatprep.subr.mxu0 %v398
        %408 = vmatpush1.msra.mxu0 %v397
        %409 = vmatprep.subr.mxu0 %v394
        %410 = vmatpush1.msra.mxu0 %v393
        %411 = vmatprep.subr.mxu0 %v390
        %412 = vmatpush1.msra.mxu0 %v389
        %413 = vmatprep.subr.mxu0 %v386
        %414 = vmatpush1.msra.mxu0 %v385
        %415 = vmatprep.subr.mxu0 %v382
        %416 = vmatpush1.msra.mxu0 %v381
        %417 = vmatprep.subr.mxu0 %v378
        %418 = vmatpush1.msra.mxu0 %v377
        %419 = vmatprep.subr.mxu0 %v374
        %420 = vmatpush1.msra.mxu0 %v373
        %421 = vmatprep.subr.mxu0 %v370
        %422 = vmatpush1.msra.mxu0 %v369
        %423 = vmatprep.subr.mxu0 %v366
        %424 = vmatpush1.msra.mxu0 %v365
        %425 = vmatprep.subr.mxu0 %v362
        %426 = vmatpush1.msra.mxu0 %v361
        %427 = vmatprep.subr.mxu0 %v358
        %428 = vmatpush1.msra.mxu0 %v357
        %429 = vmatprep.subr.mxu0 %v354
        %430 = vmatpush1.msra.mxu0 %v353
        %431 = vmatprep.subr.mxu0 %v350
        %432 = vmatpush1.msra.mxu0 %v349
        %433 = vmatprep.subr.mxu0 %v346
        %434 = vmatpush1.msra.mxu0 %v345
        %435 = vmatprep.subr.mxu0 %v342
        %436 = vmatpush1.msra.mxu0 %v341
        %437 = vmatprep.subr.mxu0 0.0
        %438 = vmatpush2.msra.mxu0 0.0
        %439 = vmatprep.subr.mxu0 0.0
        %440 = vmatpush2.msra.mxu0 0.0
        %441 = vmatprep.subr.mxu0 0.0
        %442 = vmatpush2.msra.mxu0 0.0
        %443 = vmatprep.subr.mxu0 0.0
        %444 = vmatpush2.msra.mxu0 0.0
        %445 = vmatprep.subr.mxu0 0.0
        %446 = vmatpush2.msra.mxu0 0.0
        %447 = vmatprep.subr.mxu0 0.0
        %448 = vmatpush2.msra.mxu0 0.0
        %449 = vmatprep.subr.mxu0 0.0
        %450 = vmatpush2.msra.mxu0 0.0
        %451 = vmatprep.subr.mxu0 0.0
        %452 = vmatpush2.msra.mxu0 0.0
        %453 = vmatprep.subr.mxu0 0.0
        %454 = vmatpush2.msra.mxu0 0.0
        %455 = vmatprep.subr.mxu0 0.0
        %456 = vmatpush2.msra.mxu0 0.0
        %457 = vmatprep.subr.mxu0 0.0
        %458 = vmatpush2.msra.mxu0 0.0
        %459 = vmatprep.subr.mxu0 0.0
        %460 = vmatpush2.msra.mxu0 0.0
        %461 = vmatprep.subr.mxu0 0.0
        %462 = vmatpush2.msra.mxu0 0.0
        %463 = vmatprep.subr.mxu0 0.0
        %464 = vmatpush2.msra.mxu0 0.0
        %465 = vmatprep.subr.mxu0 0.0
        %466 = vmatpush2.msra.mxu0 0.0
        %467 = vmatprep.subr.mxu0 0.0
        %468 = vmatpush2.msra.mxu0 0.0
        %469 = vmatprep.mubr.f32.mxu0 0.0
        %470 = vmatmul.mubr.f32.gmra.mxu0 %v340
        %v471 = vpop.f32.mrf.mxu0
        %v472 = vadd.f32 0.0, %v471
        %v473 = vpop.f32.mrf.mxu0
        %v474 = vadd.f32 0.0, %v473
        %475 = vdwg.mxu0
        %476 = vmatprep.subr.mxu0 %v404
        %477 = vmatpush1.msra.mxu0 %v403
        %478 = vmatprep.subr.mxu0 %v400
        %479 = vmatpush1.msra.mxu0 %v399
        %480 = vmatprep.subr.mxu0 %v396
        %481 = vmatpush1.msra.mxu0 %v395
        %482 = vmatprep.subr.mxu0 %v392
        %483 = vmatpush1.msra.mxu0 %v391
        %484 = vmatprep.subr.mxu0 %v388
        %485 = vmatpush1.msra.mxu0 %v387
        %486 = vmatprep.subr.mxu0 %v384
        %487 = vmatpush1.msra.mxu0 %v383
        %488 = vmatprep.subr.mxu0 %v380
        %489 = vmatpush1.msra.mxu0 %v379
        %490 = vmatprep.subr.mxu0 %v376
        %491 = vmatpush1.msra.mxu0 %v375
        %492 = vmatprep.subr.mxu0 %v372
        %493 = vmatpush1.msra.mxu0 %v371
        %494 = vmatprep.subr.mxu0 %v368
        %495 = vmatpush1.msra.mxu0 %v367
        %496 = vmatprep.subr.mxu0 %v364
        %497 = vmatpush1.msra.mxu0 %v363
        %498 = vmatprep.subr.mxu0 %v360
        %499 = vmatpush1.msra.mxu0 %v359
        %500 = vmatprep.subr.mxu0 %v356
        %501 = vmatpush1.msra.mxu0 %v355
        %502 = vmatprep.subr.mxu0 %v352
        %503 = vmatpush1.msra.mxu0 %v351
        %504 = vmatprep.subr.mxu0 %v348
        %505 = vmatpush1.msra.mxu0 %v347
        %506 = vmatprep.subr.mxu0 %v344
        %507 = vmatpush1.msra.mxu0 %v343
        %508 = vmatprep.subr.mxu0 0.0
        %509 = vmatpush2.msra.mxu0 0.0
        %510 = vmatprep.subr.mxu0 0.0
        %511 = vmatpush2.msra.mxu0 0.0
        %512 = vmatprep.subr.mxu0 0.0
        %513 = vmatpush2.msra.mxu0 0.0
        %514 = vmatprep.subr.mxu0 0.0
        %515 = vmatpush2.msra.mxu0 0.0
        %516 = vmatprep.subr.mxu0 0.0
        %517 = vmatpush2.msra.mxu0 0.0
        %518 = vmatprep.subr.mxu0 0.0
        %519 = vmatpush2.msra.mxu0 0.0
        %520 = vmatprep.subr.mxu0 0.0
        %521 = vmatpush2.msra.mxu0 0.0
        %522 = vmatprep.subr.mxu0 0.0
        %523 = vmatpush2.msra.mxu0 0.0
        %524 = vmatprep.subr.mxu0 0.0
        %525 = vmatpush2.msra.mxu0 0.0
        %526 = vmatprep.subr.mxu0 0.0
        %527 = vmatpush2.msra.mxu0 0.0
        %528 = vmatprep.subr.mxu0 0.0
        %529 = vmatpush2.msra.mxu0 0.0
        %530 = vmatprep.subr.mxu0 0.0
        %531 = vmatpush2.msra.mxu0 0.0
        %532 = vmatprep.subr.mxu0 0.0
        %533 = vmatpush2.msra.mxu0 0.0
        %534 = vmatprep.subr.mxu0 0.0
        %535 = vmatpush2.msra.mxu0 0.0
        %536 = vmatprep.subr.mxu0 0.0
        %537 = vmatpush2.msra.mxu0 0.0
        %538 = vmatprep.subr.mxu0 0.0
        %539 = vmatpush2.msra.mxu0 0.0
        %540 = vmatprep.mubr.f32.mxu0 0.0
        %541 = vmatmul.mubr.f32.gmra.mxu0 %v340
        %v542 = vpop.f32.mrf.mxu0
        %v543 = vadd.f32 0.0, %v542
        %v544 = vpop.f32.mrf.mxu0
        %v545 = vadd.f32 0.0, %v544
        %546 = vdwg.mxu0
        %vm547 = vcmask 261120
        %v549 = vsel %vm547, %v323, 0
        %551 = vmatprep.subr.mxu0 0.0
        %552 = vmatpush1.msra.mxu0 0.0
        %553 = vmatprep.subr.mxu0 0.0
        %554 = vmatpush1.msra.mxu0 0.0
        %555 = vmatprep.subr.mxu0 0.0
        %556 = vmatpush1.msra.mxu0 0.0
        %557 = vmatprep.subr.mxu0 0.0
        %558 = vmatpush1.msra.mxu0 0.0
        %559 = vmatprep.subr.mxu0 0.0
        %560 = vmatpush1.msra.mxu0 0.0
        %561 = vmatprep.subr.mxu0 0.0
        %562 = vmatpush1.msra.mxu0 0.0
        %563 = vmatprep.subr.mxu0 0.0
        %564 = vmatpush1.msra.mxu0 0.0
        %565 = vmatprep.subr.mxu0 0.0
        %566 = vmatpush1.msra.mxu0 0.0
        %567 = vmatprep.subr.mxu0 0.0
        %568 = vmatpush1.msra.mxu0 0.0
        %569 = vmatprep.subr.mxu0 0.0
        %570 = vmatpush1.msra.mxu0 0.0
        %571 = vmatprep.subr.mxu0 0.0
        %572 = vmatpush1.msra.mxu0 0.0
        %573 = vmatprep.subr.mxu0 0.0
        %574 = vmatpush1.msra.mxu0 0.0
        %575 = vmatprep.subr.mxu0 %v337
        %576 = vmatpush1.msra.mxu0 %v336
        %577 = vmatprep.subr.mxu0 %v333
        %578 = vmatpush1.msra.mxu0 %v332
        %579 = vmatprep.subr.mxu0 %v329
        %580 = vmatpush1.msra.mxu0 %v328
        %581 = vmatprep.subr.mxu0 %v325
        %582 = vmatpush1.msra.mxu0 %v324
        %583 = vmatprep.subr.mxu0 0.0
        %584 = vmatpush2.msra.mxu0 0.0
        %585 = vmatprep.subr.mxu0 0.0
        %586 = vmatpush2.msra.mxu0 0.0
        %587 = vmatprep.subr.mxu0 0.0
        %588 = vmatpush2.msra.mxu0 0.0
        %589 = vmatprep.subr.mxu0 0.0
        %590 = vmatpush2.msra.mxu0 0.0
        %591 = vmatprep.subr.mxu0 0.0
        %592 = vmatpush2.msra.mxu0 0.0
        %593 = vmatprep.subr.mxu0 0.0
        %594 = vmatpush2.msra.mxu0 0.0
        %595 = vmatprep.subr.mxu0 0.0
        %596 = vmatpush2.msra.mxu0 0.0
        %597 = vmatprep.subr.mxu0 0.0
        %598 = vmatpush2.msra.mxu0 0.0
        %599 = vmatprep.subr.mxu0 0.0
        %600 = vmatpush2.msra.mxu0 0.0
        %601 = vmatprep.subr.mxu0 0.0
        %602 = vmatpush2.msra.mxu0 0.0
        %603 = vmatprep.subr.mxu0 0.0
        %604 = vmatpush2.msra.mxu0 0.0
        %605 = vmatprep.subr.mxu0 0.0
        %606 = vmatpush2.msra.mxu0 0.0
        %607 = vmatprep.subr.mxu0 0.0
        %608 = vmatpush2.msra.mxu0 0.0
        %609 = vmatprep.subr.mxu0 0.0
        %610 = vmatpush2.msra.mxu0 0.0
        %611 = vmatprep.subr.mxu0 0.0
        %612 = vmatpush2.msra.mxu0 0.0
        %613 = vmatprep.subr.mxu0 0.0
        %614 = vmatpush2.msra.mxu0 0.0
        %615 = vmatprep.mubr.f32.mxu0 0.0
        %616 = vmatmul.mubr.f32.gmra.mxu0 %v549
        %v617 = vpop.f32.mrf.mxu0
        %v618 = vadd.f32 %v472, %v617
        %v619 = vpop.f32.mrf.mxu0
        %v620 = vadd.f32 %v474, %v619
        %621 = vdwg.mxu0
        %622 = vmatprep.subr.mxu0 0.0
        %623 = vmatpush1.msra.mxu0 0.0
        %624 = vmatprep.subr.mxu0 0.0
        %625 = vmatpush1.msra.mxu0 0.0
        %626 = vmatprep.subr.mxu0 0.0
        %627 = vmatpush1.msra.mxu0 0.0
        %628 = vmatprep.subr.mxu0 0.0
        %629 = vmatpush1.msra.mxu0 0.0
        %630 = vmatprep.subr.mxu0 0.0
        %631 = vmatpush1.msra.mxu0 0.0
        %632 = vmatprep.subr.mxu0 0.0
        %633 = vmatpush1.msra.mxu0 0.0
        %634 = vmatprep.subr.mxu0 0.0
        %635 = vmatpush1.msra.mxu0 0.0
        %636 = vmatprep.subr.mxu0 0.0
        %637 = vmatpush1.msra.mxu0 0.0
        %638 = vmatprep.subr.mxu0 0.0
        %639 = vmatpush1.msra.mxu0 0.0
        %640 = vmatprep.subr.mxu0 0.0
        %641 = vmatpush1.msra.mxu0 0.0
        %642 = vmatprep.subr.mxu0 0.0
        %643 = vmatpush1.msra.mxu0 0.0
        %644 = vmatprep.subr.mxu0 0.0
        %645 = vmatpush1.msra.mxu0 0.0
        %646 = vmatprep.subr.mxu0 %v339
        %647 = vmatpush1.msra.mxu0 %v338
        %648 = vmatprep.subr.mxu0 %v335
        %649 = vmatpush1.msra.mxu0 %v334
        %650 = vmatprep.subr.mxu0 %v331
        %651 = vmatpush1.msra.mxu0 %v330
        %652 = vmatprep.subr.mxu0 %v327
        %653 = vmatpush1.msra.mxu0 %v326
        %654 = vmatprep.subr.mxu0 0.0
        %655 = vmatpush2.msra.mxu0 0.0
        %656 = vmatprep.subr.mxu0 0.0
        %657 = vmatpush2.msra.mxu0 0.0
        %658 = vmatprep.subr.mxu0 0.0
        %659 = vmatpush2.msra.mxu0 0.0
        %660 = vmatprep.subr.mxu0 0.0
        %661 = vmatpush2.msra.mxu0 0.0
        %662 = vmatprep.subr.mxu0 0.0
        %663 = vmatpush2.msra.mxu0 0.0
        %664 = vmatprep.subr.mxu0 0.0
        %665 = vmatpush2.msra.mxu0 0.0
        %666 = vmatprep.subr.mxu0 0.0
        %667 = vmatpush2.msra.mxu0 0.0
        %668 = vmatprep.subr.mxu0 0.0
        %669 = vmatpush2.msra.mxu0 0.0
        %670 = vmatprep.subr.mxu0 0.0
        %671 = vmatpush2.msra.mxu0 0.0
        %672 = vmatprep.subr.mxu0 0.0
        %673 = vmatpush2.msra.mxu0 0.0
        %674 = vmatprep.subr.mxu0 0.0
        %675 = vmatpush2.msra.mxu0 0.0
        %676 = vmatprep.subr.mxu0 0.0
        %677 = vmatpush2.msra.mxu0 0.0
        %678 = vmatprep.subr.mxu0 0.0
        %679 = vmatpush2.msra.mxu0 0.0
        %680 = vmatprep.subr.mxu0 0.0
        %681 = vmatpush2.msra.mxu0 0.0
        %682 = vmatprep.subr.mxu0 0.0
        %683 = vmatpush2.msra.mxu0 0.0
        %684 = vmatprep.subr.mxu0 0.0
        %685 = vmatpush2.msra.mxu0 0.0
        %686 = vmatprep.mubr.f32.mxu0 0.0
        %687 = vmatmul.mubr.f32.gmra.mxu0 %v549
        %v688 = vpop.f32.mrf.mxu0
        %v689 = vadd.f32 %v543, %v688
        %v690 = vpop.f32.mrf.mxu0
        %v691 = vadd.f32 %v545, %v690
        %692 = vdwg.mxu0
        %v693 = vld [vmem:[#allocation3] sm:$0xff]
        %v694 = vld [vmem:[#allocation7] sm:$0xff]
        %v695 = vld [vmem:[#allocation7 + $0x8] sm:$0xff]
        %v696 = vld [vmem:[#allocation7 + $0x10] sm:$0xff]
        %v697 = vld [vmem:[#allocation7 + $0x18] sm:$0xff]
        %v698 = vld [vmem:[#allocation7 + $0x20] sm:$0xff]
        %v699 = vld [vmem:[#allocation7 + $0x28] sm:$0xff]
        %v700 = vld [vmem:[#allocation7 + $0x30] sm:$0xff]
        %v701 = vld [vmem:[#allocation7 + $0x38] sm:$0xff]
        %v702 = vld [vmem:[#allocation7 + $0x40] sm:$0xff]
        %v703 = vld [vmem:[#allocation7 + $0x48] sm:$0xff]
        %v704 = vld [vmem:[#allocation7 + $0x50] sm:$0xff]
        %v705 = vld [vmem:[#allocation7 + $0x58] sm:$0xff]
        %v706 = vld [vmem:[#allocation7 + $0x60] sm:$0xff]
        %v707 = vld [vmem:[#allocation7 + $0x68] sm:$0xff]
        %v708 = vld [vmem:[#allocation7 + $0x70] sm:$0xff]
        %v709 = vld [vmem:[#allocation7 + $0x78] sm:$0xff]
        %v710 = vld [vmem:[#allocation7 + $0x80] sm:$0xff]
        %v711 = vld [vmem:[#allocation7 + $0x88] sm:$0xff]
        %v712 = vld [vmem:[#allocation7 + $0x90] sm:$0xff]
        %v713 = vld [vmem:[#allocation7 + $0x98] sm:$0xff]
        %v714 = vld [vmem:[#allocation7 + $0xa0] sm:$0xff]
        %v715 = vld [vmem:[#allocation7 + $0xa8] sm:$0xff]
        %v716 = vld [vmem:[#allocation7 + $0xb0] sm:$0xff]
        %v717 = vld [vmem:[#allocation7 + $0xb8] sm:$0xff]
        %v718 = vld [vmem:[#allocation7 + $0xc0] sm:$0xff]
        %v719 = vld [vmem:[#allocation7 + $0xc8] sm:$0xff]
        %v720 = vld [vmem:[#allocation7 + $0xd0] sm:$0xff]
        %v721 = vld [vmem:[#allocation7 + $0xd8] sm:$0xff]
        %v722 = vld [vmem:[#allocation7 + $0xe0] sm:$0xff]
        %v723 = vld [vmem:[#allocation7 + $0xe8] sm:$0xff]
        %v724 = vld [vmem:[#allocation7 + $0xf0] sm:$0xff]
        %v725 = vld [vmem:[#allocation7 + $0xf8] sm:$0xff]
        %v726 = vld [vmem:[#allocation7 + $0x100] sm:$0xff]
        %v727 = vld [vmem:[#allocation7 + $0x108] sm:$0xff]
        %v728 = vld [vmem:[#allocation7 + $0x110] sm:$0xff]
        %v729 = vld [vmem:[#allocation7 + $0x118] sm:$0xff]
        %v730 = vld [vmem:[#allocation7 + $0x120] sm:$0xff]
        %v731 = vld [vmem:[#allocation7 + $0x128] sm:$0xff]
        %v732 = vld [vmem:[#allocation7 + $0x130] sm:$0xff]
        %v733 = vld [vmem:[#allocation7 + $0x138] sm:$0xff]
        %v734 = vld [vmem:[#allocation7 + $0x140] sm:$0xff]
        %v735 = vld [vmem:[#allocation7 + $0x148] sm:$0xff]
        %v736 = vld [vmem:[#allocation7 + $0x150] sm:$0xff]
        %v737 = vld [vmem:[#allocation7 + $0x158] sm:$0xff]
        %v738 = vld [vmem:[#allocation7 + $0x160] sm:$0xff]
        %v739 = vld [vmem:[#allocation7 + $0x168] sm:$0xff]
        %v740 = vld [vmem:[#allocation7 + $0x170] sm:$0xff]
        %v741 = vld [vmem:[#allocation7 + $0x178] sm:$0xff]
        %v742 = vld [vmem:[#allocation7 + $0x180] sm:$0xff]
        %v743 = vld [vmem:[#allocation7 + $0x188] sm:$0xff]
        %v744 = vld [vmem:[#allocation7 + $0x190] sm:$0xff]
        %v745 = vld [vmem:[#allocation7 + $0x198] sm:$0xff]
        %v746 = vld [vmem:[#allocation7 + $0x1a0] sm:$0xff]
        %v747 = vld [vmem:[#allocation7 + $0x1a8] sm:$0xff]
        %v748 = vld [vmem:[#allocation7 + $0x1b0] sm:$0xff]
        %v749 = vld [vmem:[#allocation7 + $0x1b8] sm:$0xff]
        %v750 = vld [vmem:[#allocation7 + $0x1c0] sm:$0xff]
        %v751 = vld [vmem:[#allocation7 + $0x1c8] sm:$0xff]
        %v752 = vld [vmem:[#allocation7 + $0x1d0] sm:$0xff]
        %v753 = vld [vmem:[#allocation7 + $0x1d8] sm:$0xff]
        %v754 = vld [vmem:[#allocation7 + $0x1e0] sm:$0xff]
        %v755 = vld [vmem:[#allocation7 + $0x1e8] sm:$0xff]
        %v756 = vld [vmem:[#allocation7 + $0x1f0] sm:$0xff]
        %v757 = vld [vmem:[#allocation7 + $0x1f8] sm:$0xff]
        %758 = vmatprep.subr.mxu0 %v755
        %759 = vmatpush1.msra.mxu0 %v754
        %760 = vmatprep.subr.mxu0 %v751
        %761 = vmatpush1.msra.mxu0 %v750
        %762 = vmatprep.subr.mxu0 %v747
        %763 = vmatpush1.msra.mxu0 %v746
        %764 = vmatprep.subr.mxu0 %v743
        %765 = vmatpush1.msra.mxu0 %v742
        %766 = vmatprep.subr.mxu0 %v739
        %767 = vmatpush1.msra.mxu0 %v738
        %768 = vmatprep.subr.mxu0 %v735
        %769 = vmatpush1.msra.mxu0 %v734
        %770 = vmatprep.subr.mxu0 %v731
        %771 = vmatpush1.msra.mxu0 %v730
        %772 = vmatprep.subr.mxu0 %v727
        %773 = vmatpush1.msra.mxu0 %v726
        %774 = vmatprep.subr.mxu0 %v723
        %775 = vmatpush1.msra.mxu0 %v722
        %776 = vmatprep.subr.mxu0 %v719
        %777 = vmatpush1.msra.mxu0 %v718
        %778 = vmatprep.subr.mxu0 %v715
        %779 = vmatpush1.msra.mxu0 %v714
        %780 = vmatprep.subr.mxu0 %v711
        %781 = vmatpush1.msra.mxu0 %v710
        %782 = vmatprep.subr.mxu0 %v707
        %783 = vmatpush1.msra.mxu0 %v706
        %784 = vmatprep.subr.mxu0 %v703
        %785 = vmatpush1.msra.mxu0 %v702
        %786 = vmatprep.subr.mxu0 %v699
        %787 = vmatpush1.msra.mxu0 %v698
        %788 = vmatprep.subr.mxu0 %v695
        %789 = vmatpush1.msra.mxu0 %v694
        %790 = vmatprep.subr.mxu0 0.0
        %791 = vmatpush2.msra.mxu0 0.0
        %792 = vmatprep.subr.mxu0 0.0
        %793 = vmatpush2.msra.mxu0 0.0
        %794 = vmatprep.subr.mxu0 0.0
        %795 = vmatpush2.msra.mxu0 0.0
        %796 = vmatprep.subr.mxu0 0.0
        %797 = vmatpush2.msra.mxu0 0.0
        %798 = vmatprep.subr.mxu0 0.0
        %799 = vmatpush2.msra.mxu0 0.0
        %800 = vmatprep.subr.mxu0 0.0
        %801 = vmatpush2.msra.mxu0 0.0
        %802 = vmatprep.subr.mxu0 0.0
        %803 = vmatpush2.msra.mxu0 0.0
        %804 = vmatprep.subr.mxu0 0.0
        %805 = vmatpush2.msra.mxu0 0.0
        %806 = vmatprep.subr.mxu0 0.0
        %807 = vmatpush2.msra.mxu0 0.0
        %808 = vmatprep.subr.mxu0 0.0
        %809 = vmatpush2.msra.mxu0 0.0
        %810 = vmatprep.subr.mxu0 0.0
        %811 = vmatpush2.msra.mxu0 0.0
        %812 = vmatprep.subr.mxu0 0.0
        %813 = vmatpush2.msra.mxu0 0.0
        %814 = vmatprep.subr.mxu0 0.0
        %815 = vmatpush2.msra.mxu0 0.0
        %816 = vmatprep.subr.mxu0 0.0
        %817 = vmatpush2.msra.mxu0 0.0
        %818 = vmatprep.subr.mxu0 0.0
        %819 = vmatpush2.msra.mxu0 0.0
        %820 = vmatprep.subr.mxu0 0.0
        %821 = vmatpush2.msra.mxu0 0.0
        %822 = vmatprep.mubr.f32.mxu0 0.0
        %823 = vmatmul.mubr.f32.gmra.mxu0 %v693
        %v824 = vpop.f32.mrf.mxu0
        %v825 = vadd.f32 0.0, %v824
        %v826 = vpop.f32.mrf.mxu0
        %v827 = vadd.f32 0.0, %v826
        %828 = vdwg.mxu0
        %829 = vmatprep.subr.mxu0 %v757
        %830 = vmatpush1.msra.mxu0 %v756
        %831 = vmatprep.subr.mxu0 %v753
        %832 = vmatpush1.msra.mxu0 %v752
        %833 = vmatprep.subr.mxu0 %v749
        %834 = vmatpush1.msra.mxu0 %v748
        %835 = vmatprep.subr.mxu0 %v745
        %836 = vmatpush1.msra.mxu0 %v744
        %837 = vmatprep.subr.mxu0 %v741
        %838 = vmatpush1.msra.mxu0 %v740
        %839 = vmatprep.subr.mxu0 %v737
        %840 = vmatpush1.msra.mxu0 %v736
        %841 = vmatprep.subr.mxu0 %v733
        %842 = vmatpush1.msra.mxu0 %v732
        %843 = vmatprep.subr.mxu0 %v729
        %844 = vmatpush1.msra.mxu0 %v728
        %845 = vmatprep.subr.mxu0 %v725
        %846 = vmatpush1.msra.mxu0 %v724
        %847 = vmatprep.subr.mxu0 %v721
        %848 = vmatpush1.msra.mxu0 %v720
        %849 = vmatprep.subr.mxu0 %v717
        %850 = vmatpush1.msra.mxu0 %v716
        %851 = vmatprep.subr.mxu0 %v713
        %852 = vmatpush1.msra.mxu0 %v712
        %853 = vmatprep.subr.mxu0 %v709
        %854 = vmatpush1.msra.mxu0 %v708
        %855 = vmatprep.subr.mxu0 %v705
        %856 = vmatpush1.msra.mxu0 %v704
        %857 = vmatprep.subr.mxu0 %v701
        %858 = vmatpush1.msra.mxu0 %v700
        %859 = vmatprep.subr.mxu0 %v697
        %860 = vmatpush1.msra.mxu0 %v696
        %861 = vmatprep.subr.mxu0 0.0
        %862 = vmatpush2.msra.mxu0 0.0
        %863 = vmatprep.subr.mxu0 0.0
        %864 = vmatpush2.msra.mxu0 0.0
        %865 = vmatprep.subr.mxu0 0.0
        %866 = vmatpush2.msra.mxu0 0.0
        %867 = vmatprep.subr.mxu0 0.0
        %868 = vmatpush2.msra.mxu0 0.0
        %869 = vmatprep.subr.mxu0 0.0
        %870 = vmatpush2.msra.mxu0 0.0
        %871 = vmatprep.subr.mxu0 0.0
        %872 = vmatpush2.msra.mxu0 0.0
        %873 = vmatprep.subr.mxu0 0.0
        %874 = vmatpush2.msra.mxu0 0.0
        %875 = vmatprep.subr.mxu0 0.0
        %876 = vmatpush2.msra.mxu0 0.0
        %877 = vmatprep.subr.mxu0 0.0
        %878 = vmatpush2.msra.mxu0 0.0
        %879 = vmatprep.subr.mxu0 0.0
        %880 = vmatpush2.msra.mxu0 0.0
        %881 = vmatprep.subr.mxu0 0.0
        %882 = vmatpush2.msra.mxu0 0.0
        %883 = vmatprep.subr.mxu0 0.0
        %884 = vmatpush2.msra.mxu0 0.0
        %885 = vmatprep.subr.mxu0 0.0
        %886 = vmatpush2.msra.mxu0 0.0
        %887 = vmatprep.subr.mxu0 0.0
        %888 = vmatpush2.msra.mxu0 0.0
        %889 = vmatprep.subr.mxu0 0.0
        %890 = vmatpush2.msra.mxu0 0.0
        %891 = vmatprep.subr.mxu0 0.0
        %892 = vmatpush2.msra.mxu0 0.0
        %893 = vmatprep.mubr.f32.mxu0 0.0
        %894 = vmatmul.mubr.f32.gmra.mxu0 %v693
        %v895 = vpop.f32.mrf.mxu0
        %v896 = vadd.f32 0.0, %v895
        %v897 = vpop.f32.mrf.mxu0
        %v898 = vadd.f32 0.0, %v897
        %899 = vdwg.mxu0
        %v900 = vadd.f32 %v618, %v825
        %v901 = vadd.f32 %v620, %v827
        %v902 = vadd.f32 %v689, %v896
        %v903 = vadd.f32 %v691, %v898
        %v904 = vld [vmem:[%s1] sm:$0xff]
        %v905 = vld [vmem:[%s1 + $0x8] sm:$0xff]
        %v906 = vld [vmem:[%s1 + $0x10] sm:$0xff]
        %v907 = vld [vmem:[%s1 + $0x18] sm:$0xff]
        %v908 = vadd.f32 %v900, %v904
        %v909 = vadd.f32 %v901, %v905
        %v910 = vadd.f32 %v902, %v906
        %v911 = vadd.f32 %v903, %v907
        %v912 = vtanh.pop %v908
        %v913 = vtanh.pop %v909
        %v914 = vtanh.pop %v910
        %v915 = vtanh.pop %v911
        %v916 = vld [vmem:[#allocation9] sm:$0xff]
        %v917 = vld [vmem:[#allocation9 + $0x8] sm:$0xff]
        %v918 = vld [vmem:[#allocation9 + $0x10] sm:$0xff]
        %v919 = vld [vmem:[#allocation9 + $0x18] sm:$0xff]
        %v920 = vld [vmem:[#allocation9 + $0x20] sm:$0xff]
        %v921 = vld [vmem:[#allocation9 + $0x28] sm:$0xff]
        %v922 = vld [vmem:[#allocation9 + $0x30] sm:$0xff]
        %v923 = vld [vmem:[#allocation9 + $0x38] sm:$0xff]
        %v924 = vld [vmem:[#allocation9 + $0x40] sm:$0xff]
        %v925 = vld [vmem:[#allocation9 + $0x48] sm:$0xff]
        %v926 = vld [vmem:[#allocation9 + $0x50] sm:$0xff]
        %v927 = vld [vmem:[#allocation9 + $0x58] sm:$0xff]
        %v928 = vld [vmem:[#allocation9 + $0x60] sm:$0xff]
        %v929 = vld [vmem:[#allocation9 + $0x68] sm:$0xff]
        %v930 = vld [vmem:[#allocation9 + $0x70] sm:$0xff]
        %v931 = vld [vmem:[#allocation9 + $0x78] sm:$0xff]
        %v932 = vld [vmem:[#allocation9 + $0x80] sm:$0xff]
        %v933 = vld [vmem:[#allocation9 + $0x88] sm:$0xff]
        %v934 = vld [vmem:[#allocation9 + $0x90] sm:$0xff]
        %v935 = vld [vmem:[#allocation9 + $0x98] sm:$0xff]
        %v936 = vld [vmem:[#allocation9 + $0xa0] sm:$0xff]
        %v937 = vld [vmem:[#allocation9 + $0xa8] sm:$0xff]
        %v938 = vld [vmem:[#allocation9 + $0xb0] sm:$0xff]
        %v939 = vld [vmem:[#allocation9 + $0xb8] sm:$0xff]
        %v940 = vld [vmem:[#allocation9 + $0xc0] sm:$0xff]
        %v941 = vld [vmem:[#allocation9 + $0xc8] sm:$0xff]
        %v942 = vld [vmem:[#allocation9 + $0xd0] sm:$0xff]
        %v943 = vld [vmem:[#allocation9 + $0xd8] sm:$0xff]
        %v944 = vld [vmem:[#allocation9 + $0xe0] sm:$0xff]
        %v945 = vld [vmem:[#allocation9 + $0xe8] sm:$0xff]
        %v946 = vld [vmem:[#allocation9 + $0xf0] sm:$0xff]
        %v947 = vld [vmem:[#allocation9 + $0xf8] sm:$0xff]
        %v948 = vld [vmem:[#allocation9 + $0x100] sm:$0xff]
        %v949 = vld [vmem:[#allocation9 + $0x108] sm:$0xff]
        %v950 = vld [vmem:[#allocation9 + $0x110] sm:$0xff]
        %v951 = vld [vmem:[#allocation9 + $0x118] sm:$0xff]
        %v952 = vld [vmem:[#allocation9 + $0x120] sm:$0xff]
        %v953 = vld [vmem:[#allocation9 + $0x128] sm:$0xff]
        %v954 = vld [vmem:[#allocation9 + $0x130] sm:$0xff]
        %v955 = vld [vmem:[#allocation9 + $0x138] sm:$0xff]
        %v956 = vld [vmem:[#allocation9 + $0x140] sm:$0xff]
        %v957 = vld [vmem:[#allocation9 + $0x148] sm:$0xff]
        %v958 = vld [vmem:[#allocation9 + $0x150] sm:$0xff]
        %v959 = vld [vmem:[#allocation9 + $0x158] sm:$0xff]
        %v960 = vld [vmem:[#allocation9 + $0x160] sm:$0xff]
        %v961 = vld [vmem:[#allocation9 + $0x168] sm:$0xff]
        %v962 = vld [vmem:[#allocation9 + $0x170] sm:$0xff]
        %v963 = vld [vmem:[#allocation9 + $0x178] sm:$0xff]
        %v964 = vld [vmem:[#allocation9 + $0x180] sm:$0xff]
        %v965 = vld [vmem:[#allocation9 + $0x188] sm:$0xff]
        %v966 = vld [vmem:[#allocation9 + $0x190] sm:$0xff]
        %v967 = vld [vmem:[#allocation9 + $0x198] sm:$0xff]
        %v968 = vld [vmem:[#allocation9 + $0x1a0] sm:$0xff]
        %v969 = vld [vmem:[#allocation9 + $0x1a8] sm:$0xff]
        %v970 = vld [vmem:[#allocation9 + $0x1b0] sm:$0xff]
        %v971 = vld [vmem:[#allocation9 + $0x1b8] sm:$0xff]
        %v972 = vld [vmem:[#allocation9 + $0x1c0] sm:$0xff]
        %v973 = vld [vmem:[#allocation9 + $0x1c8] sm:$0xff]
        %v974 = vld [vmem:[#allocation9 + $0x1d0] sm:$0xff]
        %v975 = vld [vmem:[#allocation9 + $0x1d8] sm:$0xff]
        %v976 = vld [vmem:[#allocation9 + $0x1e0] sm:$0xff]
        %v977 = vld [vmem:[#allocation9 + $0x1e8] sm:$0xff]
        %v978 = vld [vmem:[#allocation9 + $0x1f0] sm:$0xff]
        %v979 = vld [vmem:[#allocation9 + $0x1f8] sm:$0xff]
        %980 = vmatprep.subr.mxu0 0.0
        %981 = vmatpush1.msra.mxu0 %v931
        %982 = vmatprep.subr.mxu0 0.0
        %983 = vmatpush1.msra.mxu0 %v930
        %984 = vmatprep.subr.mxu0 0.0
        %985 = vmatpush1.msra.mxu0 %v929
        %986 = vmatprep.subr.mxu0 0.0
        %987 = vmatpush1.msra.mxu0 %v928
        %988 = vmatprep.subr.mxu0 0.0
        %989 = vmatpush1.msra.mxu0 %v927
        %990 = vmatprep.subr.mxu0 0.0
        %991 = vmatpush1.msra.mxu0 %v926
        %992 = vmatprep.subr.mxu0 0.0
        %993 = vmatpush1.msra.mxu0 %v925
        %994 = vmatprep.subr.mxu0 0.0
        %995 = vmatpush1.msra.mxu0 %v924
        %996 = vmatprep.subr.mxu0 0.0
        %997 = vmatpush1.msra.mxu0 %v923
        %998 = vmatprep.subr.mxu0 0.0
        %999 = vmatpush1.msra.mxu0 %v922
        %1000 = vmatprep.subr.mxu0 0.0
        %1001 = vmatpush1.msra.mxu0 %v921
        %1002 = vmatprep.subr.mxu0 0.0
        %1003 = vmatpush1.msra.mxu0 %v920
        %1004 = vmatprep.subr.mxu0 0.0
        %1005 = vmatpush1.msra.mxu0 %v919
        %1006 = vmatprep.subr.mxu0 0.0
        %1007 = vmatpush1.msra.mxu0 %v918
        %1008 = vmatprep.subr.mxu0 0.0
        %1009 = vmatpush1.msra.mxu0 %v917
        %1010 = vmatprep.subr.mxu0 0.0
        %1011 = vmatpush1.msra.mxu0 %v916
        %1012 = vmatprep.subr.mxu0 0.0
        %1013 = vmatpush2.msra.mxu0 %v947
        %1014 = vmatprep.subr.mxu0 0.0
        %1015 = vmatpush2.msra.mxu0 %v946
        %1016 = vmatprep.subr.mxu0 0.0
        %1017 = vmatpush2.msra.mxu0 %v945
        %1018 = vmatprep.subr.mxu0 0.0
        %1019 = vmatpush2.msra.mxu0 %v944
        %1020 = vmatprep.subr.mxu0 0.0
        %1021 = vmatpush2.msra.mxu0 %v943
        %1022 = vmatprep.subr.mxu0 0.0
        %1023 = vmatpush2.msra.mxu0 %v942
        %1024 = vmatprep.subr.mxu0 0.0
        %1025 = vmatpush2.msra.mxu0 %v941
        %1026 = vmatprep.subr.mxu0 0.0
        %1027 = vmatpush2.msra.mxu0 %v940
        %1028 = vmatprep.subr.mxu0 0.0
        %1029 = vmatpush2.msra.mxu0 %v939
        %1030 = vmatprep.subr.mxu0 0.0
        %1031 = vmatpush2.msra.mxu0 %v938
        %1032 = vmatprep.subr.mxu0 0.0
        %1033 = vmatpush2.msra.mxu0 %v937
        %1034 = vmatprep.subr.mxu0 0.0
        %1035 = vmatpush2.msra.mxu0 %v936
        %1036 = vmatprep.subr.mxu0 0.0
        %1037 = vmatpush2.msra.mxu0 %v935
        %1038 = vmatprep.subr.mxu0 0.0
        %1039 = vmatpush2.msra.mxu0 %v934
        %1040 = vmatprep.subr.mxu0 0.0
        %1041 = vmatpush2.msra.mxu0 %v933
        %1042 = vmatprep.subr.mxu0 0.0
        %1043 = vmatpush2.msra.mxu0 %v932
        %1044 = vmatprep.mubr.f32.mxu0 %v913
        %1045 = vmatmul.mubr.f32.gmra.mxu0 %v912
        %v1046 = vpop.f32.mrf.mxu0
        %v1047 = vadd.f32 0.0, %v1046
        %v1048 = vpop.f32.mrf.mxu0
        %1049 = vdwg.mxu0
        %1050 = vmatprep.subr.mxu0 0.0
        %1051 = vmatpush1.msra.mxu0 %v963
        %1052 = vmatprep.subr.mxu0 0.0
        %1053 = vmatpush1.msra.mxu0 %v962
        %1054 = vmatprep.subr.mxu0 0.0
        %1055 = vmatpush1.msra.mxu0 %v961
        %1056 = vmatprep.subr.mxu0 0.0
        %1057 = vmatpush1.msra.mxu0 %v960
        %1058 = vmatprep.subr.mxu0 0.0
        %1059 = vmatpush1.msra.mxu0 %v959
        %1060 = vmatprep.subr.mxu0 0.0
        %1061 = vmatpush1.msra.mxu0 %v958
        %1062 = vmatprep.subr.mxu0 0.0
        %1063 = vmatpush1.msra.mxu0 %v957
        %1064 = vmatprep.subr.mxu0 0.0
        %1065 = vmatpush1.msra.mxu0 %v956
        %1066 = vmatprep.subr.mxu0 0.0
        %1067 = vmatpush1.msra.mxu0 %v955
        %1068 = vmatprep.subr.mxu0 0.0
        %1069 = vmatpush1.msra.mxu0 %v954
        %1070 = vmatprep.subr.mxu0 0.0
        %1071 = vmatpush1.msra.mxu0 %v953
        %1072 = vmatprep.subr.mxu0 0.0
        %1073 = vmatpush1.msra.mxu0 %v952
        %1074 = vmatprep.subr.mxu0 0.0
        %1075 = vmatpush1.msra.mxu0 %v951
        %1076 = vmatprep.subr.mxu0 0.0
        %1077 = vmatpush1.msra.mxu0 %v950
        %1078 = vmatprep.subr.mxu0 0.0
        %1079 = vmatpush1.msra.mxu0 %v949
        %1080 = vmatprep.subr.mxu0 0.0
        %1081 = vmatpush1.msra.mxu0 %v948
        %1082 = vmatprep.subr.mxu0 0.0
        %1083 = vmatpush2.msra.mxu0 %v979
        %1084 = vmatprep.subr.mxu0 0.0
        %1085 = vmatpush2.msra.mxu0 %v978
        %1086 = vmatprep.subr.mxu0 0.0
        %1087 = vmatpush2.msra.mxu0 %v977
        %1088 = vmatprep.subr.mxu0 0.0
        %1089 = vmatpush2.msra.mxu0 %v976
        %1090 = vmatprep.subr.mxu0 0.0
        %1091 = vmatpush2.msra.mxu0 %v975
        %1092 = vmatprep.subr.mxu0 0.0
        %1093 = vmatpush2.msra.mxu0 %v974
        %1094 = vmatprep.subr.mxu0 0.0
        %1095 = vmatpush2.msra.mxu0 %v973
        %1096 = vmatprep.subr.mxu0 0.0
        %1097 = vmatpush2.msra.mxu0 %v972
        %1098 = vmatprep.subr.mxu0 0.0
        %1099 = vmatpush2.msra.mxu0 %v971
        %1100 = vmatprep.subr.mxu0 0.0
        %1101 = vmatpush2.msra.mxu0 %v970
        %1102 = vmatprep.subr.mxu0 0.0
        %1103 = vmatpush2.msra.mxu0 %v969
        %1104 = vmatprep.subr.mxu0 0.0
        %1105 = vmatpush2.msra.mxu0 %v968
        %1106 = vmatprep.subr.mxu0 0.0
        %1107 = vmatpush2.msra.mxu0 %v967
        %1108 = vmatprep.subr.mxu0 0.0
        %1109 = vmatpush2.msra.mxu0 %v966
        %1110 = vmatprep.subr.mxu0 0.0
        %1111 = vmatpush2.msra.mxu0 %v965
        %1112 = vmatprep.subr.mxu0 0.0
        %1113 = vmatpush2.msra.mxu0 %v964
        %1114 = vmatprep.mubr.f32.mxu0 %v915
        %1115 = vmatmul.mubr.f32.gmra.mxu0 %v914
        %v1116 = vpop.f32.mrf.mxu0
        %v1117 = vadd.f32 %v1047, %v1116
        %v1118 = vpop.f32.mrf.mxu0
        %1119 = vdwg.mxu0
        %v1120 = vlaneseq
        %v1121 = vand.u32 %v1120, 127
        %vm1122 = vcmp.lt.s32.totalorder %v1121, 16
        %v1123 = vxor.u32 %v1117, 2147483648
        %v1124 = vmul.f32 %v1123, 1.442695
        %v1125 = vpow.pop %v1124
        %v1126 = vadd.f32 %v1125, 1.0
        %v1127 = vrcp.pop %v1126
        %v1128 = vmul.f32 1.0, %v1127
        %v1129 = vsel %vm1122, %v1128, 0.0
        %1130 = vadd.xlane.f32.xlu0 %v1129
        %v1131 = vpop.xlane.xlu0 %1130
        %v1132 = vrcp.pop %v1131
        %v1133 = vmul.f32 %v1129, %v1132
        %v1134 = vadd.f32 %v340, %v1133
        %1135 = vst [vmem:[%s316] sm:$0xff] %v1133
        %1136 = vst [vmem:[#allocation3] sm:$0xff] %v1133
        %1137 = vst [vmem:[#allocation2] sm:$0xff] %v1134
        %1138 = vst [vmem:[#allocation10] sm:$0xff] %v1134
        %p1139 = scmp.lt.s32.totalorder %s22, 5
        %s1140 = scalar_select %p1139, %s22, 5
        %s1141 = smul.addr %s1140, 8
        %s1142 = scalar_lea.vmem %s6, %s1141
        // Predicated region
        $region61: #{lsa_decode.1} parent=43 // pred_check
          %p1143 = pneg %p171
        $region62: #{lsa_decode.1} parent=43 // pred_check_branch
          %1145 = sbr.rel (%p1143) target = $region64
        $region63: #{lsa_decode.1} parent=43 // pred_region
          _
        $region64: #{lsa_decode.1} parent=43 // pred_fallthru
          _
        // Predicated region
        $region65: #{lsa_decode.1} parent=43 // pred_check
          %p1146 = pneg %p192
        $region66: #{lsa_decode.1} parent=43 // pred_check_branch
          %1148 = sbr.rel (%p1146) target = $region68
        $region67: #{lsa_decode.1} parent=43 // pred_region
          %s1150 = ssub.s32 128, 128
          %1151 = vsyncadd [#allocation6], %s1150
          %s1153 = sshll.u32 [#allocation10], 4
          %s1154 = int_to_ptr.vmem [resolvable:$true] %s1153
          %1156 = dma.vmem_to_hbm [thread:$0]  %s1154, 128, %s7, [#allocation6]
        $region68: #{lsa_decode.1} parent=43 // pred_fallthru
          _
        // Predicated region
        $region69: #{lsa_decode.1} parent=43 // pred_check
          %p1157 = pneg %p192
        $region70: #{lsa_decode.1} parent=43 // pred_check_branch
          %1159 = sbr.rel (%p1157) target = $region72
        $region71: #{lsa_decode.1} parent=43 // pred_region
          %1160 = dma.done [#allocation6], 128
        $region72: #{lsa_decode.1} parent=43 // pred_fallthru
          _
      $region44: #{lsa_decode.1} parent=5 // pred_fallthru
        _
      %p1161 = scmp.le.s32.totalorder 2, %s17
      // Predicated region
      $region73: #{lsa_decode.1} parent=5 // pred_check
        %p1162 = pneg %p1161
      $region74: #{lsa_decode.1} parent=5 // pred_check_branch
        %1164 = sbr.rel (%p1162) target = $region76
      $region75: #{lsa_decode.1} parent=5 // pred_region
        %s1165 = ssub.s32 %s17, 2
        // Predicated region
        $region77: #{lsa_decode.1} parent=75 // pred_check
          %p1166 = pneg %p177
        $region78: #{lsa_decode.1} parent=75 // pred_check_branch
          %1168 = sbr.rel (%p1166) target = $region80
        $region79: #{lsa_decode.1} parent=75 // pred_region
          %p1169 = scmp.lt.s32.totalorder %s23, 5
          %s1170 = scalar_select %p1169, %s23, 5
          %s1171 = smul.addr %s1170, 8
          %s1172 = scalar_lea.vmem %s6, %s1171
        $region80: #{lsa_decode.1} parent=75 // pred_fallthru
          _
      $region76: #{lsa_decode.1} parent=5 // pred_fallthru
        _
    $region6: #{lsa_decode.1} parent=1 // loop_footer
      %s21 = sadd.s32 1, %s17
    $region7: #{lsa_decode.1} parent=1 // loop_footer_branch
      %16 = sbr.rel target = $region3
    $region8: #{lsa_decode.1} parent=1 // loop_exit
      _
    %1173 = vsyncpa [#allocation5], 1
    %s1174 = scalar_lea.sflag [#allocation5], 1
    %1175 = vsyncpa %s1174, 1
    %1176 = vsyncpa [#allocation8], 1
    %1177 = vsyncpa [#allocation6], 1
    %s1178 = scalar_lea.sflag [#allocation6], 1
    %1179 = vsyncpa %s1178, 1

</llo_original>
